<compile_context>
chip_gen: v7x
topology: tpu7x:2x2x1
jax: 0.10.0
libtpu: 0.0.40
codegen_flags: <defaults>
</compile_context>

<pallas_src>
import functools

import jax
import jax.numpy as jnp
from jax.experimental import pallas as pl
from jax.experimental.pallas import tpu as pltpu


def _round_up(x, m):
    return ((x + m - 1) // m) * m


def _pick_tile_b(B):
    """Pick a batch tile.

    The grid is a serial loop on v5e/v6e (one TensorCore) and only 2-way
    parallel on v7x, so splitting into multiple grid steps only pays once the
    per-step work swamps the ~0.35us per-step pipeline overhead.  Tiles are
    multiples of 16 so bf16 activations pack sublanes cleanly.
    """
    if B <= 512:
        return _round_up(max(B, 1), 16)   # single grid step
    return 256                            # >= 3 steps, >= 256 rows each


def _encoder_kernel(enc_dim, compute_dtype, act_dtype, *refs):
    """Fused MLP encoder: input layer -> enc_dim hidden layers -> fused heads.

    MXU operands are cast to `compute_dtype` (f32 or bf16); accumulation is f32
    via preferred_element_type.  Bias add / ReLU run in f32 (safe on v5e's VPU);
    `act_dtype` only controls the storage dtype of h between layers (bf16
    halves the activation footprint on v6e/v7x).
    """
    if enc_dim > 0:
        (x_ref, win_ref, bin_ref, wh_ref, bh_ref,
         whead_ref, bhead_ref, out_ref) = refs
    else:
        x_ref, win_ref, bin_ref, whead_ref, bhead_ref, out_ref = refs
        wh_ref = bh_ref = None

    x = x_ref[...].astype(compute_dtype)
    h = jnp.dot(x, win_ref[...], preferred_element_type=jnp.float32)
    h = jnp.maximum(h + bin_ref[...], 0.0).astype(act_dtype)

    # Hidden layers (static Python loop; enc_dim is a compile-time constant).
    for i in range(enc_dim):
        h = jnp.dot(h.astype(compute_dtype), wh_ref[i],
                    preferred_element_type=jnp.float32)
        h = jnp.maximum(h + bh_ref[i], 0.0).astype(act_dtype)

    # Fused (mean | log_var) head, lane-dense (padded to a multiple of 128).
    out_ref[...] = (jnp.dot(h.astype(compute_dtype), whead_ref[...],
                            preferred_element_type=jnp.float32)
                    + bhead_ref[...]).astype(out_ref.dtype)


def prepare_params(params, *, compute_dtype=jnp.float32, act_dtype=None):
    """One-time weight preprocessing (hoisted out of the per-call hot path).

    Takes PyTorch-convention params (out, in) and returns kernel-ready layout:
      * weights transposed to (in, out) and optionally cast to bf16
        (recommended on v5e/v6e/v7x alike — the MXU is natively bf16),
      * hidden width zero-padded to a multiple of 128 lanes,
      * biases reshaped to (1, out) and kept f32,
      * mean/var heads concatenated and zero-padded to a 128-lane multiple.
    """
    if act_dtype is None:
        act_dtype = jnp.float32

    node = params["w_in"].shape[0]
    input_dim = params["w_in"].shape[1]
    latent = params["w_mean"].shape[0]
    enc_dim = params["w_hid"].shape[0]

    node_pad = _round_up(node, 128)
    head = 2 * latent
    head_pad = _round_up(head, 128)
    pn = node_pad - node
    ph = head_pad - head

    w_in = jnp.pad(params["w_in"].T, ((0, 0), (0, pn)))                    # (in, node_pad)
    b_in = jnp.pad(params["b_in"], (0, pn))[None, :]                       # (1, node_pad)
    w_hid = jnp.pad(jnp.transpose(params["w_hid"], (0, 2, 1)),
                    ((0, 0), (0, pn), (0, pn)))                            # (E, node_pad, node_pad)
    b_hid = jnp.pad(params["b_hid"], ((0, 0), (0, pn)))[:, None, :]        # (E, 1, node_pad)

    w_head = jnp.concatenate([params["w_mean"].T, params["w_var"].T], axis=1)
    b_head = jnp.concatenate([params["b_mean"], params["b_var"]], axis=0)
    w_head = jnp.pad(w_head, ((0, pn), (0, ph)))                           # (node_pad, head_pad)
    b_head = jnp.pad(b_head, (0, ph))[None, :]                             # (1, head_pad)

    return {
        "w_in": w_in.astype(compute_dtype),
        "b_in": b_in.astype(jnp.float32),
        "w_hid": w_hid.astype(compute_dtype),
        "b_hid": b_hid.astype(jnp.float32),
        "w_head": w_head.astype(compute_dtype),
        "b_head": b_head.astype(jnp.float32),
        "latent": latent,
        "input_dim": input_dim,
        "node_pad": node_pad,
        "head_pad": head_pad,
        "enc_dim": enc_dim,
        "compute_dtype": compute_dtype,
        "act_dtype": act_dtype,
    }


def encoder_forward(x, kparams, *, enc_dim=None, tile_b=None):
    """Run the fused encoder kernel.

    x: [B, input_dim] float32; kparams: output of prepare_params().
    Returns (mean, log_var), each [B, latent] float32.
    """
    if enc_dim is None:
        enc_dim = kparams["enc_dim"]
    B, input_dim = x.shape
    node_pad = kparams["node_pad"]
    latent = kparams["latent"]
    head_pad = kparams["head_pad"]
    compute_dtype = kparams["compute_dtype"]
    act_dtype = kparams["act_dtype"]

    if tile_b is None:
        tile_b = _pick_tile_b(B)
    B_pad = _round_up(B, tile_b)
    if B_pad != B:
        # TODO(synk): drop this pad (grid=pl.cdiv with unpadded x) once the
        # partial-boundary-block read semantics are validated on-device; the
        # junk rows are mathematically harmless (row-independent MLP) and the
        # wrapper already slices the padded output rows off.
        x = jnp.pad(x, ((0, B_pad - B), (0, 0)))

    grid = (B_pad // tile_b,)

    w_in, b_in = kparams["w_in"], kparams["b_in"]
    w_hid, b_hid = kparams["w_hid"], kparams["b_hid"]
    w_head, b_head = kparams["w_head"], kparams["b_head"]

    def const_spec(shape):
        # Block is identical for every grid step -> single-buffer it; default
        # double-buffering would just double its resident VMEM for no benefit.
        rank = len(shape)
        return pl.BlockSpec(shape, lambda *_: (0,) * rank,
                            pipeline_mode=pl.Buffered(1))

    in_specs = [
        pl.BlockSpec((tile_b, input_dim), lambda i: (i, 0)),   # x (batch-tiled)
        const_spec((input_dim, node_pad)),                     # w_in
        const_spec((1, node_pad)),                             # b_in
    ]
    operands = [x, w_in, b_in]
    if enc_dim > 0:   # guard: a (0, n, n) block would not lower
        in_specs += [const_spec((enc_dim, node_pad, node_pad)),  # w_hid
                     const_spec((enc_dim, 1, node_pad))]         # b_hid
        operands += [w_hid, b_hid]
    in_specs += [const_spec((node_pad, head_pad)),             # w_head
                 const_spec((1, head_pad))]                    # b_head
    operands += [w_head, b_head]

    weight_bytes = sum(int(a.size) * a.dtype.itemsize for a in operands[1:])
    cost = pl.CostEstimate(
        flops=2 * B_pad * (input_dim * node_pad
                           + enc_dim * node_pad * node_pad
                           + node_pad * head_pad),
        transcendentals=0,
        bytes_accessed=B_pad * input_dim * 4 + weight_bytes + B_pad * head_pad * 4,
    )

    # VMEM budget: weights single-buffered + double-buffered x / out tiles.
    io_bytes = 2 * tile_b * (input_dim + head_pad) * 4
    vmem_est = weight_bytes + io_bytes + (1 << 20)   # + ~1 MiB slack
    compiler_kwargs = dict(dimension_semantics=("parallel",))
    if vmem_est > 30 * 1024 * 1024:
        # TODO(synk): beyond ~48 MiB resident weights, stream w_hid via a
        # hidden-layer grid axis instead of raising the limit — v7x only has
        # 64 MiB physical VMEM (vs 128 MiB on v5e/v6e).
        compiler_kwargs["vmem_limit_bytes"] = min(int(vmem_est * 1.2), 100 << 20)

    out = pl.pallas_call(
        functools.partial(_encoder_kernel, enc_dim, compute_dtype, act_dtype),
        out_shape=jax.ShapeDtypeStruct((B_pad, head_pad), jnp.float32),
        grid_spec=pltpu.PrefetchScalarGridSpec(
            num_scalar_prefetch=0,
            grid=grid,
            in_specs=in_specs,
            out_specs=pl.BlockSpec((tile_b, head_pad), lambda i: (i, 0)),
        ),
        compiler_params=pltpu.CompilerParams(**compiler_kwargs),
        cost_estimate=cost,
    )(*operands)

    mean = out[:B, :latent]
    log_var = out[:B, latent:2 * latent]
    return mean, log_var


def make_params(key, *, enc_dim, input_dim, latent_dim, node_count):
    """Deterministic synthetic parameters in PyTorch nn.Linear convention."""
    ks = jax.random.split(key, 8)
    scale = 0.1
    return {
        "w_in": scale * jax.random.normal(ks[0], (node_count, input_dim), jnp.float32),
        "b_in": scale * jax.random.normal(ks[1], (node_count,), jnp.float32),
        "w_hid": scale * jax.random.normal(ks[2], (enc_dim, node_count, node_count), jnp.float32),
        "b_hid": scale * jax.random.normal(ks[3], (enc_dim, node_count), jnp.float32),
        "w_mean": scale * jax.random.normal(ks[4], (latent_dim, node_count), jnp.float32),
        "b_mean": scale * jax.random.normal(ks[5], (latent_dim,), jnp.float32),
        "w_var": scale * jax.random.normal(ks[6], (latent_dim, node_count), jnp.float32),
        "b_var": scale * jax.random.normal(ks[7], (latent_dim,), jnp.float32),
    }


def encoder_ref(x, params, *, enc_dim):
    """Pure-JAX reference matching the PyTorch forward."""
    act = lambda v: jnp.maximum(v, 0.0)
    h = act(x @ params["w_in"].T + params["b_in"])
    for i in range(enc_dim):
        h = act(h @ params["w_hid"][i].T + params["b_hid"][i])
    mean = h @ params["w_mean"].T + params["b_mean"]
    log_var = h @ params["w_var"].T + params["b_var"]
    return mean, log_var


if __name__ == "__main__":
    # Small shapes consistent with the module's __init__.
    ENC_DIM = 2        # number of hidden (node_count -> node_count) layers
    INPUT_DIM = 32
    LATENT_DIM = 16
    NODE_COUNT = 64    # padded to 128 lanes inside prepare_params
    BATCH = 256        # <= 512 -> single grid step (no per-step overhead waste)

    key = jax.random.PRNGKey(0)
    kx, kp = jax.random.split(key)
    x = jax.random.normal(kx, (BATCH, INPUT_DIM), jnp.float32)
    params = make_params(kp, enc_dim=ENC_DIM, input_dim=INPUT_DIM,
                         latent_dim=LATENT_DIM, node_count=NODE_COUNT)

    mean_ref_v, logvar_ref_v = encoder_ref(x, params, enc_dim=ENC_DIM)

    # --- f32 path: exact check against the reference -------------------------
    kp_f32 = prepare_params(params, compute_dtype=jnp.float32)
    mean, log_var = encoder_forward(x, kp_f32, enc_dim=ENC_DIM)
    jax.block_until_ready((mean, log_var))
    assert mean.shape == (BATCH, LATENT_DIM) and log_var.shape == (BATCH, LATENT_DIM)
    assert jnp.allclose(mean, mean_ref_v, atol=1e-5, rtol=1e-5)
    assert jnp.allclose(log_var, logvar_ref_v, atol=1e-5, rtol=1e-5)

    # --- bf16 operands (all TPU gens) + bf16 inter-layer activation storage ---
    kp_bf16 = prepare_params(params, compute_dtype=jnp.bfloat16,
                             act_dtype=jnp.bfloat16)
    mean_b, logvar_b = encoder_forward(x, kp_bf16, enc_dim=ENC_DIM)
    jax.block_until_ready((mean_b, logvar_b))
    assert jnp.allclose(mean_b, mean_ref_v, atol=5e-2, rtol=5e-2)
    assert jnp.allclose(logvar_b, logvar_ref_v, atol=5e-2, rtol=5e-2)

    # --- ragged batch (exercises the pad/slice path) --------------------------
    x_r = x[:37]
    mean_r, logvar_r = encoder_forward(x_r, kp_f32, enc_dim=ENC_DIM)
    jax.block_until_ready((mean_r, logvar_r))
    assert jnp.allclose(mean_r, mean_ref_v[:37], atol=1e-5, rtol=1e-5)
    assert jnp.allclose(logvar_r, logvar_ref_v[:37], atol=1e-5, rtol=1e-5)

    print("KERNEL_OK")
</pallas_src>

<mosaic_0001>
module attributes {stable_mosaic.version = 11 : i64} {
  func.func @_encoder_kernel(%arg0: i32, %arg1: memref<256x32xf32, #tpu.memory_space<vmem>>, %arg2: memref<32x128xf32, #tpu.memory_space<vmem>>, %arg3: memref<1x128xf32, #tpu.memory_space<vmem>>, %arg4: memref<2x128x128xf32, #tpu.memory_space<vmem>>, %arg5: memref<2x1x128xf32, #tpu.memory_space<vmem>>, %arg6: memref<128x128xf32, #tpu.memory_space<vmem>>, %arg7: memref<1x128xf32, #tpu.memory_space<vmem>>, %arg8: memref<256x128xf32, #tpu.memory_space<vmem>>) attributes {dimension_semantics = [#tpu.dimension_semantics<parallel>], iteration_bounds = array<i64: 1>, scalar_prefetch = 0 : i64, scratch_operands = 0 : i64, tpu.core_type = #tpu.core_type<tc>, window_params = [{transform_indices = @transform_0, window_bounds = array<i64: 256, 32>}, {pipeline_mode = #tpu.pipeline_mode<synchronous>, transform_indices = @transform_1, window_bounds = array<i64: 32, 128>}, {pipeline_mode = #tpu.pipeline_mode<synchronous>, transform_indices = @transform_2, window_bounds = array<i64: 1, 128>}, {pipeline_mode = #tpu.pipeline_mode<synchronous>, transform_indices = @transform_3, window_bounds = array<i64: 2, 128, 128>}, {pipeline_mode = #tpu.pipeline_mode<synchronous>, transform_indices = @transform_4, window_bounds = array<i64: 2, 1, 128>}, {pipeline_mode = #tpu.pipeline_mode<synchronous>, transform_indices = @transform_5, window_bounds = array<i64: 128, 128>}, {pipeline_mode = #tpu.pipeline_mode<synchronous>, transform_indices = @transform_6, window_bounds = array<i64: 1, 128>}, {transform_indices = @transform_7, window_bounds = array<i64: 256, 128>}]} {
    %c0 = arith.constant 0 : index
    %c0_0 = arith.constant 0 : index
    %0 = vector.load %arg1[%c0, %c0_0] : memref<256x32xf32, #tpu.memory_space<vmem>>, vector<256x32xf32>
    %c0_1 = arith.constant 0 : index
    %c0_2 = arith.constant 0 : index
    %1 = vector.load %arg2[%c0_1, %c0_2] : memref<32x128xf32, #tpu.memory_space<vmem>>, vector<32x128xf32>
    %cst = arith.constant dense<0.000000e+00> : vector<256x128xf32>
    %2 = tpu.matmul %0, %1, %cst {dimension_numbers = #tpu.dot_dimension_numbers<[1], [0], [0], [1], [0, 0, 1, 1], [], []>} : vector<256x32xf32>, vector<32x128xf32>, vector<256x128xf32> -> vector<256x128xf32>
    %c0_3 = arith.constant 0 : index
    %c0_4 = arith.constant 0 : index
    %3 = vector.load %arg3[%c0_3, %c0_4] : memref<1x128xf32, #tpu.memory_space<vmem>>, vector<1x128xf32>
    %4 = vector.broadcast %3 : vector<1x128xf32> to vector<256x128xf32>
    %5 = arith.addf %2, %4 : vector<256x128xf32>
    %cst_5 = arith.constant 0.000000e+00 : f32
    %6 = vector.broadcast %cst_5 : f32 to vector<256x128xf32>
    %7 = arith.maximumf %5, %6 : vector<256x128xf32>
    %c0_6 = arith.constant 0 : index
    %c0_7 = arith.constant 0 : index
    %c0_8 = arith.constant 0 : index
    %8 = vector.load %arg4[%c0_6, %c0_7, %c0_8] : memref<2x128x128xf32, #tpu.memory_space<vmem>>, vector<1x128x128xf32>
    %9 = vector.shape_cast %8 : vector<1x128x128xf32> to vector<128x128xf32>
    %cst_9 = arith.constant dense<0.000000e+00> : vector<256x128xf32>
    %10 = tpu.matmul %7, %9, %cst_9 {dimension_numbers = #tpu.dot_dimension_numbers<[1], [0], [0], [1], [0, 0, 1, 1], [], []>} : vector<256x128xf32>, vector<128x128xf32>, vector<256x128xf32> -> vector<256x128xf32>
    %c0_10 = arith.constant 0 : index
    %c0_11 = arith.constant 0 : index
    %c0_12 = arith.constant 0 : index
    %11 = vector.load %arg5[%c0_10, %c0_11, %c0_12] : memref<2x1x128xf32, #tpu.memory_space<vmem>>, vector<1x1x128xf32>
    %12 = vector.shape_cast %11 : vector<1x1x128xf32> to vector<1x128xf32>
    %13 = vector.broadcast %12 : vector<1x128xf32> to vector<256x128xf32>
    %14 = arith.addf %10, %13 : vector<256x128xf32>
    %cst_13 = arith.constant 0.000000e+00 : f32
    %15 = vector.broadcast %cst_13 : f32 to vector<256x128xf32>
    %16 = arith.maximumf %14, %15 : vector<256x128xf32>
    %c1 = arith.constant 1 : index
    %c0_14 = arith.constant 0 : index
    %c0_15 = arith.constant 0 : index
    %17 = vector.load %arg4[%c1, %c0_14, %c0_15] : memref<2x128x128xf32, #tpu.memory_space<vmem>>, vector<1x128x128xf32>
    %18 = vector.shape_cast %17 : vector<1x128x128xf32> to vector<128x128xf32>
    %cst_16 = arith.constant dense<0.000000e+00> : vector<256x128xf32>
    %19 = tpu.matmul %16, %18, %cst_16 {dimension_numbers = #tpu.dot_dimension_numbers<[1], [0], [0], [1], [0, 0, 1, 1], [], []>} : vector<256x128xf32>, vector<128x128xf32>, vector<256x128xf32> -> vector<256x128xf32>
    %c1_17 = arith.constant 1 : index
    %c0_18 = arith.constant 0 : index
    %c0_19 = arith.constant 0 : index
    %20 = vector.load %arg5[%c1_17, %c0_18, %c0_19] : memref<2x1x128xf32, #tpu.memory_space<vmem>>, vector<1x1x128xf32>
    %21 = vector.shape_cast %20 : vector<1x1x128xf32> to vector<1x128xf32>
    %22 = vector.broadcast %21 : vector<1x128xf32> to vector<256x128xf32>
    %23 = arith.addf %19, %22 : vector<256x128xf32>
    %cst_20 = arith.constant 0.000000e+00 : f32
    %24 = vector.broadcast %cst_20 : f32 to vector<256x128xf32>
    %25 = arith.maximumf %23, %24 : vector<256x128xf32>
    %c0_21 = arith.constant 0 : index
    %c0_22 = arith.constant 0 : index
    %26 = vector.load %arg6[%c0_21, %c0_22] : memref<128x128xf32, #tpu.memory_space<vmem>>, vector<128x128xf32>
    %cst_23 = arith.constant dense<0.000000e+00> : vector<256x128xf32>
    %27 = tpu.matmul %25, %26, %cst_23 {dimension_numbers = #tpu.dot_dimension_numbers<[1], [0], [0], [1], [0, 0, 1, 1], [], []>} : vector<256x128xf32>, vector<128x128xf32>, vector<256x128xf32> -> vector<256x128xf32>
    %c0_24 = arith.constant 0 : index
    %c0_25 = arith.constant 0 : index
    %28 = vector.load %arg7[%c0_24, %c0_25] : memref<1x128xf32, #tpu.memory_space<vmem>>, vector<1x128xf32>
    %29 = vector.broadcast %28 : vector<1x128xf32> to vector<256x128xf32>
    %30 = arith.addf %27, %29 : vector<256x128xf32>
    %c0_26 = arith.constant 0 : index
    %c0_27 = arith.constant 0 : index
    %31 = vector.load %arg8[%c0_26, %c0_27] : memref<256x128xf32, #tpu.memory_space<vmem>>, vector<256x128xf32>
    tpu.vector_store %arg8[%c0_26, %c0_27], %30 {strides = array<i32>} : memref<256x128xf32, #tpu.memory_space<vmem>>, vector<256x128xf32>,
    return
  }
  func.func @transform_0(%arg0: i32) -> (i32, i32) {
    %c0_i32 = arith.constant 0 : i32
    %c0_i32_0 = arith.constant 0 : i32
    return %arg0, %c0_i32 : i32, i32
  }
  func.func @transform_1(%arg0: i32) -> (i32, i32) {
    %c0_i32 = arith.constant 0 : i32
    %c0_i32_0 = arith.constant 0 : i32
    %c0_i32_1 = arith.constant 0 : i32
    return %c0_i32, %c0_i32_0 : i32, i32
  }
  func.func @transform_2(%arg0: i32) -> (i32, i32) {
    %c0_i32 = arith.constant 0 : i32
    %c0_i32_0 = arith.constant 0 : i32
    %c0_i32_1 = arith.constant 0 : i32
    return %c0_i32, %c0_i32_0 : i32, i32
  }
  func.func @transform_3(%arg0: i32) -> (i32, i32, i32) {
    %c0_i32 = arith.constant 0 : i32
    %c0_i32_0 = arith.constant 0 : i32
    %c0_i32_1 = arith.constant 0 : i32
    %c0_i32_2 = arith.constant 0 : i32
    return %c0_i32, %c0_i32_0, %c0_i32_1 : i32, i32, i32
  }
  func.func @transform_4(%arg0: i32) -> (i32, i32, i32) {
    %c0_i32 = arith.constant 0 : i32
    %c0_i32_0 = arith.constant 0 : i32
    %c0_i32_1 = arith.constant 0 : i32
    %c0_i32_2 = arith.constant 0 : i32
    return %c0_i32, %c0_i32_0, %c0_i32_1 : i32, i32, i32
  }
  func.func @transform_5(%arg0: i32) -> (i32, i32) {
    %c0_i32 = arith.constant 0 : i32
    %c0_i32_0 = arith.constant 0 : i32
    %c0_i32_1 = arith.constant 0 : i32
    return %c0_i32, %c0_i32_0 : i32, i32
  }
  func.func @transform_6(%arg0: i32) -> (i32, i32) {
    %c0_i32 = arith.constant 0 : i32
    %c0_i32_0 = arith.constant 0 : i32
    %c0_i32_1 = arith.constant 0 : i32
    return %c0_i32, %c0_i32_0 : i32, i32
  }
  func.func @transform_7(%arg0: i32) -> (i32, i32) {
    %c0_i32 = arith.constant 0 : i32
    %c0_i32_0 = arith.constant 0 : i32
    return %arg0, %c0_i32 : i32, i32
  }
}

</mosaic_0001>

<llo_original>
// kernel: tpu_custom_call.1
$region0: #{tpu_custom_call.1}
  #allocation0 [shape = 'u32[]', space=smem, size = 0x4, offset = 0x4, fixed_abs, tag = 'smem constant byte address 0x4 - core index']
  #allocation1 [shape = 'u32[144,128]{1,0:T(1,128)}', space=vmem, size = 0x12000, scoped, tag = 'internal scratch']
  %s0 = inlined_call_operand.vmem [shape: f32[256,32], index: 0, kind: input, shape index: {}]
  %s1 = inlined_call_operand.vmem [shape: f32[32,128], index: 1, kind: input, shape index: {}]
  %s2 = inlined_call_operand.vmem [shape: f32[1,128], index: 2, kind: input, shape index: {}]
  %s3 = inlined_call_operand.vmem [shape: f32[2,128,128], index: 3, kind: input, shape index: {}]
  %s4 = inlined_call_operand.vmem [shape: f32[2,1,128], index: 4, kind: input, shape index: {}]
  %s5 = inlined_call_operand.hbm [shape: f32[128,128], index: 5, kind: input, shape index: {}]
  %s6 = inlined_call_operand.vmem [shape: f32[1,128], index: 6, kind: input, shape index: {}]
  %s7 = inlined_call_operand.hbm [shape: f32[256,128], index: 7, kind: output, shape index: {}]
  %s8 = sld [smem:[#allocation0]]
  $region42: #{tpu_custom_call.1} parent=0
    _
  %s10 = ssub.s32 1, %s8
  %s11 = scalar_select 0, %s10, %s8
  $region1: #{tpu_custom_call.1} parent=0
    #allocation2 [shape = 'u8[65536]{0}', space=vmem, size = 0x10000, scoped, tag = 'input window, operand 5, single buffered']
    #allocation3 [shape = 's32[1]{0}', space=sflag, size = 0x4, scoped, tag = 'scoped memory for tpu_custom_call.1']
    #allocation4 [shape = 's32[1]{0}', space=sflag, size = 0x4, scoped, tag = 'scoped memory for tpu_custom_call.1']
    #allocation5 [shape = 'u8[131072]{0}', space=vmem, size = 0x20000, scoped, tag = 'output window, operand 0, single buffered']
    %12 = vsyncpa [#allocation3], 0
    %13 = vsyncpa [#allocation4], 0
    // Predicated region
    $region2: #{tpu_custom_call.1} parent=1 // pred_check
      _
    $region3: #{tpu_custom_call.1} parent=1 // pred_check_branch
      %15 = sbr.rel (0) target = $region5
    $region4: #{tpu_custom_call.1} parent=1 // pred_region
      _
    $region5: #{tpu_custom_call.1} parent=1 // pred_fallthru
      _
    // Predicated region
    $region6: #{tpu_custom_call.1} parent=1 // pred_check
      _
    $region7: #{tpu_custom_call.1} parent=1 // pred_check_branch
      %17 = sbr.rel (0) target = $region9
    $region8: #{tpu_custom_call.1} parent=1 // pred_region
      _
    $region9: #{tpu_custom_call.1} parent=1 // pred_fallthru
      _
    // Predicated region
    $region10: #{tpu_custom_call.1} parent=1 // pred_check
      _
    $region11: #{tpu_custom_call.1} parent=1 // pred_check_branch
      %19 = sbr.rel (0) target = $region13
    $region12: #{tpu_custom_call.1} parent=1 // pred_region
      _
    $region13: #{tpu_custom_call.1} parent=1 // pred_fallthru
      _
    // Predicated region
    $region14: #{tpu_custom_call.1} parent=1 // pred_check
      _
    $region15: #{tpu_custom_call.1} parent=1 // pred_check_branch
      %21 = sbr.rel (0) target = $region17
    $region16: #{tpu_custom_call.1} parent=1 // pred_region
      _
    $region17: #{tpu_custom_call.1} parent=1 // pred_fallthru
      _
    // Predicated region
    $region18: #{tpu_custom_call.1} parent=1 // pred_check
      _
    $region19: #{tpu_custom_call.1} parent=1 // pred_check_branch
      %23 = sbr.rel (0) target = $region21
    $region20: #{tpu_custom_call.1} parent=1 // pred_region
      _
    $region21: #{tpu_custom_call.1} parent=1 // pred_fallthru
      _
    // Predicated region
    $region22: #{tpu_custom_call.1} parent=1 // pred_check
      _
    $region23: #{tpu_custom_call.1} parent=1 // pred_check_branch
      %25 = sbr.rel (0) target = $region25
    $region24: #{tpu_custom_call.1} parent=1 // pred_region
      %s27 = ssub.s32 2048, 2048
      %28 = vsyncadd [#allocation3], %s27
      %s29 = sshll.u32 [#allocation2], 4
      %s30 = int_to_ptr.vmem [resolvable:$true] %s29
      %35 = dma.hbm_to_vmem [thread:$0]  %s5, 2048, %s30, [#allocation3], 128, 128, 8
    $region25: #{tpu_custom_call.1} parent=1 // pred_fallthru
      _
    // Predicated region
    $region26: #{tpu_custom_call.1} parent=1 // pred_check
      _
    $region27: #{tpu_custom_call.1} parent=1 // pred_check_branch
      %37 = sbr.rel (0) target = $region29
    $region28: #{tpu_custom_call.1} parent=1 // pred_region
      _
    $region29: #{tpu_custom_call.1} parent=1 // pred_fallthru
      _
    // Predicated region
    $region30: #{tpu_custom_call.1} parent=1 // pred_check
      _
    $region31: #{tpu_custom_call.1} parent=1 // pred_check_branch
      %39 = sbr.rel (0) target = $region33
    $region32: #{tpu_custom_call.1} parent=1 // pred_region
      %40 = dma.done [#allocation3], 2048
    $region33: #{tpu_custom_call.1} parent=1 // pred_fallthru
      _
    %v41 = vld [vmem:[%s0] sm:$0xff]
    %v42 = vld [vmem:[%s0 + $0x8] sm:$0xff]
    %v43 = vld [vmem:[%s0 + $0x10] sm:$0xff]
    %v44 = vld [vmem:[%s0 + $0x18] sm:$0xff]
    %v45 = vld [vmem:[%s0 + $0x20] sm:$0xff]
    %v46 = vld [vmem:[%s0 + $0x28] sm:$0xff]
    %v47 = vld [vmem:[%s0 + $0x30] sm:$0xff]
    %v48 = vld [vmem:[%s0 + $0x38] sm:$0xff]
    %v49 = vld [vmem:[%s0 + $0x40] sm:$0xff]
    %v50 = vld [vmem:[%s0 + $0x48] sm:$0xff]
    %v51 = vld [vmem:[%s0 + $0x50] sm:$0xff]
    %v52 = vld [vmem:[%s0 + $0x58] sm:$0xff]
    %v53 = vld [vmem:[%s0 + $0x60] sm:$0xff]
    %v54 = vld [vmem:[%s0 + $0x68] sm:$0xff]
    %v55 = vld [vmem:[%s0 + $0x70] sm:$0xff]
    %v56 = vld [vmem:[%s0 + $0x78] sm:$0xff]
    %v57 = vld [vmem:[%s0 + $0x80] sm:$0xff]
    %v58 = vld [vmem:[%s0 + $0x88] sm:$0xff]
    %v59 = vld [vmem:[%s0 + $0x90] sm:$0xff]
    %v60 = vld [vmem:[%s0 + $0x98] sm:$0xff]
    %v61 = vld [vmem:[%s0 + $0xa0] sm:$0xff]
    %v62 = vld [vmem:[%s0 + $0xa8] sm:$0xff]
    %v63 = vld [vmem:[%s0 + $0xb0] sm:$0xff]
    %v64 = vld [vmem:[%s0 + $0xb8] sm:$0xff]
    %v65 = vld [vmem:[%s0 + $0xc0] sm:$0xff]
    %v66 = vld [vmem:[%s0 + $0xc8] sm:$0xff]
    %v67 = vld [vmem:[%s0 + $0xd0] sm:$0xff]
    %v68 = vld [vmem:[%s0 + $0xd8] sm:$0xff]
    %v69 = vld [vmem:[%s0 + $0xe0] sm:$0xff]
    %v70 = vld [vmem:[%s0 + $0xe8] sm:$0xff]
    %v71 = vld [vmem:[%s0 + $0xf0] sm:$0xff]
    %v72 = vld [vmem:[%s0 + $0xf8] sm:$0xff]
    %v73 = vld [vmem:[%s1] sm:$0xff]
    %v74 = vld [vmem:[%s1 + $0x8] sm:$0xff]
    %v75 = vld [vmem:[%s1 + $0x10] sm:$0xff]
    %v76 = vld [vmem:[%s1 + $0x18] sm:$0xff]
    %v77 = vld [vmem:[%s2] sm:$0x1]
    %v79 = vlaneseq
    %v80 = vshrl.u32 %v79, 7
    %v81 = vsub.s32 0, %v80
    %v82 = vrot.slane %v77, %v81
    %vm84 = vcmask 261120
    %v86 = vsel %vm84, %v41, 0
    %v89 = vsel %vm84, %v42, 0
    %v92 = vsel %vm84, %v43, 0
    %v95 = vsel %vm84, %v44, 0
    %v98 = vsel %vm84, %v45, 0
    %v101 = vsel %vm84, %v46, 0
    %v104 = vsel %vm84, %v47, 0
    %v107 = vsel %vm84, %v48, 0
    %v110 = vsel %vm84, %v49, 0
    %v113 = vsel %vm84, %v50, 0
    %v116 = vsel %vm84, %v51, 0
    %v119 = vsel %vm84, %v52, 0
    %v122 = vsel %vm84, %v53, 0
    %v125 = vsel %vm84, %v54, 0
    %v128 = vsel %vm84, %v55, 0
    %v131 = vsel %vm84, %v56, 0
    %v134 = vsel %vm84, %v57, 0
    %v137 = vsel %vm84, %v58, 0
    %v140 = vsel %vm84, %v59, 0
    %v143 = vsel %vm84, %v60, 0
    %v146 = vsel %vm84, %v61, 0
    %v149 = vsel %vm84, %v62, 0
    %v152 = vsel %vm84, %v63, 0
    %v155 = vsel %vm84, %v64, 0
    %v158 = vsel %vm84, %v65, 0
    %v161 = vsel %vm84, %v66, 0
    %v164 = vsel %vm84, %v67, 0
    %v167 = vsel %vm84, %v68, 0
    %v170 = vsel %vm84, %v69, 0
    %v173 = vsel %vm84, %v70, 0
    %v176 = vsel %vm84, %v71, 0
    %v179 = vsel %vm84, %v72, 0
    %181 = vmatprep.subr.mxu0 0.0
    %182 = vmatpush1.msra.mxu0 %v73
    %183 = vmatprep.subr.mxu0 0.0
    %184 = vmatpush1.msra.mxu0 %v74
    %185 = vmatprep.subr.mxu0 0.0
    %186 = vmatpush1.msra.mxu0 %v75
    %187 = vmatprep.subr.mxu0 0.0
    %188 = vmatpush1.msra.mxu0 %v76
    %189 = vmatprep.subr.mxu0 0.0
    %190 = vmatpush1.msra.mxu0 0.0
    %191 = vmatprep.subr.mxu0 0.0
    %192 = vmatpush1.msra.mxu0 0.0
    %193 = vmatprep.subr.mxu0 0.0
    %194 = vmatpush1.msra.mxu0 0.0
    %195 = vmatprep.subr.mxu0 0.0
    %196 = vmatpush1.msra.mxu0 0.0
    %197 = vmatprep.subr.mxu0 0.0
    %198 = vmatpush1.msra.mxu0 0.0
    %199 = vmatprep.subr.mxu0 0.0
    %200 = vmatpush1.msra.mxu0 0.0
    %201 = vmatprep.subr.mxu0 0.0
    %202 = vmatpush1.msra.mxu0 0.0
    %203 = vmatprep.subr.mxu0 0.0
    %204 = vmatpush1.msra.mxu0 0.0
    %205 = vmatprep.subr.mxu0 0.0
    %206 = vmatpush1.msra.mxu0 0.0
    %207 = vmatprep.subr.mxu0 0.0
    %208 = vmatpush1.msra.mxu0 0.0
    %209 = vmatprep.subr.mxu0 0.0
    %210 = vmatpush1.msra.mxu0 0.0
    %211 = vmatprep.subr.mxu0 0.0
    %212 = vmatpush1.msra.mxu0 0.0
    %213 = vmatprep.subr.mxu0 0.0
    %214 = vmatpush1.msra.mxu0 0.0
    %215 = vmatprep.subr.mxu0 0.0
    %216 = vmatpush1.msra.mxu0 0.0
    %217 = vmatprep.subr.mxu0 0.0
    %218 = vmatpush1.msra.mxu0 0.0
    %219 = vmatprep.subr.mxu0 0.0
    %220 = vmatpush1.msra.mxu0 0.0
    %221 = vmatprep.subr.mxu0 0.0
    %222 = vmatpush1.msra.mxu0 0.0
    %223 = vmatprep.subr.mxu0 0.0
    %224 = vmatpush1.msra.mxu0 0.0
    %225 = vmatprep.subr.mxu0 0.0
    %226 = vmatpush1.msra.mxu0 0.0
    %227 = vmatprep.subr.mxu0 0.0
    %228 = vmatpush1.msra.mxu0 0.0
    %229 = vmatprep.subr.mxu0 0.0
    %230 = vmatpush1.msra.mxu0 0.0
    %231 = vmatprep.subr.mxu0 0.0
    %232 = vmatpush1.msra.mxu0 0.0
    %233 = vmatprep.subr.mxu0 0.0
    %234 = vmatpush1.msra.mxu0 0.0
    %235 = vmatprep.subr.mxu0 0.0
    %236 = vmatpush1.msra.mxu0 0.0
    %237 = vmatprep.subr.mxu0 0.0
    %238 = vmatpush1.msra.mxu0 0.0
    %239 = vmatprep.subr.mxu0 0.0
    %240 = vmatpush1.msra.mxu0 0.0
    %241 = vmatprep.subr.mxu0 0.0
    %242 = vmatpush1.msra.mxu0 0.0
    %243 = vmatprep.subr.mxu0 0.0
    %244 = vmatpush1.msra.mxu0 0.0
    %245 = vmatprep.mubr.f32.mxu0 0.0
    %246 = vmatmul.mubr.f32.gmra.mrb[0].mxu0 %v86
    %v247 = vpop.f32.mrb[0].mxu0
    %v248 = vadd.f32 %v82, %v247
    %v249 = vpop.f32.mrb[0].mxu0
    %250 = vmatprep.mubr.f32.mxu0 0.0
    %251 = vmatmul.mubr.f32.gmra.mrb[0].mxu0 %v89
    %v252 = vpop.f32.mrb[0].mxu0
    %v253 = vadd.f32 %v82, %v252
    %v254 = vpop.f32.mrb[0].mxu0
    %255 = vmatprep.mubr.f32.mxu0 0.0
    %256 = vmatmul.mubr.f32.gmra.mrb[0].mxu0 %v92
    %v257 = vpop.f32.mrb[0].mxu0
    %v258 = vadd.f32 %v82, %v257
    %v259 = vpop.f32.mrb[0].mxu0
    %260 = vmatprep.mubr.f32.mxu0 0.0
    %261 = vmatmul.mubr.f32.gmra.mrb[0].mxu0 %v95
    %v262 = vpop.f32.mrb[0].mxu0
    %v263 = vadd.f32 %v82, %v262
    %v264 = vpop.f32.mrb[0].mxu0
    %265 = vmatprep.mubr.f32.mxu0 0.0
    %266 = vmatmul.mubr.f32.gmra.mrb[0].mxu0 %v98
    %v267 = vpop.f32.mrb[0].mxu0
    %v268 = vadd.f32 %v82, %v267
    %v269 = vpop.f32.mrb[0].mxu0
    %270 = vmatprep.mubr.f32.mxu0 0.0
    %271 = vmatmul.mubr.f32.gmra.mrb[0].mxu0 %v101
    %v272 = vpop.f32.mrb[0].mxu0
    %v273 = vadd.f32 %v82, %v272
    %v274 = vpop.f32.mrb[0].mxu0
    %275 = vmatprep.mubr.f32.mxu0 0.0
    %276 = vmatmul.mubr.f32.gmra.mrb[0].mxu0 %v104
    %v277 = vpop.f32.mrb[0].mxu0
    %v278 = vadd.f32 %v82, %v277
    %v279 = vpop.f32.mrb[0].mxu0
    %280 = vmatprep.mubr.f32.mxu0 0.0
    %281 = vmatmul.mubr.f32.gmra.mrb[0].mxu0 %v107
    %v282 = vpop.f32.mrb[0].mxu0
    %v283 = vadd.f32 %v82, %v282
    %v284 = vpop.f32.mrb[0].mxu0
    %285 = vmatprep.mubr.f32.mxu0 0.0
    %286 = vmatmul.mubr.f32.gmra.mrb[0].mxu0 %v110
    %v287 = vpop.f32.mrb[0].mxu0
    %v288 = vadd.f32 %v82, %v287
    %v289 = vpop.f32.mrb[0].mxu0
    %290 = vmatprep.mubr.f32.mxu0 0.0
    %291 = vmatmul.mubr.f32.gmra.mrb[0].mxu0 %v113
    %v292 = vpop.f32.mrb[0].mxu0
    %v293 = vadd.f32 %v82, %v292
    %v294 = vpop.f32.mrb[0].mxu0
    %295 = vmatprep.mubr.f32.mxu0 0.0
    %296 = vmatmul.mubr.f32.gmra.mrb[0].mxu0 %v116
    %v297 = vpop.f32.mrb[0].mxu0
    %v298 = vadd.f32 %v82, %v297
    %v299 = vpop.f32.mrb[0].mxu0
    %300 = vmatprep.mubr.f32.mxu0 0.0
    %301 = vmatmul.mubr.f32.gmra.mrb[0].mxu0 %v119
    %v302 = vpop.f32.mrb[0].mxu0
    %v303 = vadd.f32 %v82, %v302
    %v304 = vpop.f32.mrb[0].mxu0
    %305 = vmatprep.mubr.f32.mxu0 0.0
    %306 = vmatmul.mubr.f32.gmra.mrb[0].mxu0 %v122
    %v307 = vpop.f32.mrb[0].mxu0
    %v308 = vadd.f32 %v82, %v307
    %v309 = vpop.f32.mrb[0].mxu0
    %310 = vmatprep.mubr.f32.mxu0 0.0
    %311 = vmatmul.mubr.f32.gmra.mrb[0].mxu0 %v125
    %v312 = vpop.f32.mrb[0].mxu0
    %v313 = vadd.f32 %v82, %v312
    %v314 = vpop.f32.mrb[0].mxu0
    %315 = vmatprep.mubr.f32.mxu0 0.0
    %316 = vmatmul.mubr.f32.gmra.mrb[0].mxu0 %v128
    %v317 = vpop.f32.mrb[0].mxu0
    %v318 = vadd.f32 %v82, %v317
    %v319 = vpop.f32.mrb[0].mxu0
    %320 = vmatprep.mubr.f32.mxu0 0.0
    %321 = vmatmul.mubr.f32.gmra.mrb[0].mxu0 %v131
    %v322 = vpop.f32.mrb[0].mxu0
    %v323 = vadd.f32 %v82, %v322
    %v324 = vpop.f32.mrb[0].mxu0
    %325 = vmatprep.mubr.f32.mxu0 0.0
    %326 = vmatmul.mubr.f32.gmra.mrb[0].mxu0 %v134
    %v327 = vpop.f32.mrb[0].mxu0
    %v328 = vadd.f32 %v82, %v327
    %v329 = vpop.f32.mrb[0].mxu0
    %330 = vmatprep.mubr.f32.mxu0 0.0
    %331 = vmatmul.mubr.f32.gmra.mrb[0].mxu0 %v137
    %v332 = vpop.f32.mrb[0].mxu0
    %v333 = vadd.f32 %v82, %v332
    %v334 = vpop.f32.mrb[0].mxu0
    %335 = vmatprep.mubr.f32.mxu0 0.0
    %336 = vmatmul.mubr.f32.gmra.mrb[0].mxu0 %v140
    %v337 = vpop.f32.mrb[0].mxu0
    %v338 = vadd.f32 %v82, %v337
    %v339 = vpop.f32.mrb[0].mxu0
    %340 = vmatprep.mubr.f32.mxu0 0.0
    %341 = vmatmul.mubr.f32.gmra.mrb[0].mxu0 %v143
    %v342 = vpop.f32.mrb[0].mxu0
    %v343 = vadd.f32 %v82, %v342
    %v344 = vpop.f32.mrb[0].mxu0
    %345 = vmatprep.mubr.f32.mxu0 0.0
    %346 = vmatmul.mubr.f32.gmra.mrb[0].mxu0 %v146
    %v347 = vpop.f32.mrb[0].mxu0
    %v348 = vadd.f32 %v82, %v347
    %v349 = vpop.f32.mrb[0].mxu0
    %350 = vmatprep.mubr.f32.mxu0 0.0
    %351 = vmatmul.mubr.f32.gmra.mrb[0].mxu0 %v149
    %v352 = vpop.f32.mrb[0].mxu0
    %v353 = vadd.f32 %v82, %v352
    %v354 = vpop.f32.mrb[0].mxu0
    %355 = vmatprep.mubr.f32.mxu0 0.0
    %356 = vmatmul.mubr.f32.gmra.mrb[0].mxu0 %v152
    %v357 = vpop.f32.mrb[0].mxu0
    %v358 = vadd.f32 %v82, %v357
    %v359 = vpop.f32.mrb[0].mxu0
    %360 = vmatprep.mubr.f32.mxu0 0.0
    %361 = vmatmul.mubr.f32.gmra.mrb[0].mxu0 %v155
    %v362 = vpop.f32.mrb[0].mxu0
    %v363 = vadd.f32 %v82, %v362
    %v364 = vpop.f32.mrb[0].mxu0
    %365 = vmatprep.mubr.f32.mxu0 0.0
    %366 = vmatmul.mubr.f32.gmra.mrb[0].mxu0 %v158
    %v367 = vpop.f32.mrb[0].mxu0
    %v368 = vadd.f32 %v82, %v367
    %v369 = vpop.f32.mrb[0].mxu0
    %370 = vmatprep.mubr.f32.mxu0 0.0
    %371 = vmatmul.mubr.f32.gmra.mrb[0].mxu0 %v161
    %v372 = vpop.f32.mrb[0].mxu0
    %v373 = vadd.f32 %v82, %v372
    %v374 = vpop.f32.mrb[0].mxu0
    %375 = vmatprep.mubr.f32.mxu0 0.0
    %376 = vmatmul.mubr.f32.gmra.mrb[0].mxu0 %v164
    %v377 = vpop.f32.mrb[0].mxu0
    %v378 = vadd.f32 %v82, %v377
    %v379 = vpop.f32.mrb[0].mxu0
    %380 = vmatprep.mubr.f32.mxu0 0.0
    %381 = vmatmul.mubr.f32.gmra.mrb[0].mxu0 %v167
    %v382 = vpop.f32.mrb[0].mxu0
    %v383 = vadd.f32 %v82, %v382
    %v384 = vpop.f32.mrb[0].mxu0
    %385 = vmatprep.mubr.f32.mxu0 0.0
    %386 = vmatmul.mubr.f32.gmra.mrb[0].mxu0 %v170
    %v387 = vpop.f32.mrb[0].mxu0
    %v388 = vadd.f32 %v82, %v387
    %v389 = vpop.f32.mrb[0].mxu0
    %390 = vmatprep.mubr.f32.mxu0 0.0
    %391 = vmatmul.mubr.f32.gmra.mrb[0].mxu0 %v173
    %v392 = vpop.f32.mrb[0].mxu0
    %v393 = vadd.f32 %v82, %v392
    %v394 = vpop.f32.mrb[0].mxu0
    %395 = vmatprep.mubr.f32.mxu0 0.0
    %396 = vmatmul.mubr.f32.gmra.mrb[0].mxu0 %v176
    %v397 = vpop.f32.mrb[0].mxu0
    %v398 = vadd.f32 %v82, %v397
    %v399 = vpop.f32.mrb[0].mxu0
    %400 = vmatprep.mubr.f32.mxu0 0.0
    %401 = vmatmul.mubr.f32.gmra.mrb[0].mxu0 %v179
    %v402 = vpop.f32.mrb[0].mxu0
    %v403 = vadd.f32 %v82, %v402
    %v404 = vpop.f32.mrb[0].mxu0
    %405 = vdwg.mxu0
    %v406 = vmax.f32 %v248, 0.0
    %v407 = vmax.f32 %v253, 0.0
    %v408 = vmax.f32 %v258, 0.0
    %v409 = vmax.f32 %v263, 0.0
    %v410 = vmax.f32 %v268, 0.0
    %v411 = vmax.f32 %v273, 0.0
    %v412 = vmax.f32 %v278, 0.0
    %v413 = vmax.f32 %v283, 0.0
    %v414 = vmax.f32 %v288, 0.0
    %v415 = vmax.f32 %v293, 0.0
    %v416 = vmax.f32 %v298, 0.0
    %v417 = vmax.f32 %v303, 0.0
    %v418 = vmax.f32 %v308, 0.0
    %v419 = vmax.f32 %v313, 0.0
    %v420 = vmax.f32 %v318, 0.0
    %v421 = vmax.f32 %v323, 0.0
    %v422 = vmax.f32 %v328, 0.0
    %v423 = vmax.f32 %v333, 0.0
    %v424 = vmax.f32 %v338, 0.0
    %v425 = vmax.f32 %v343, 0.0
    %v426 = vmax.f32 %v348, 0.0
    %v427 = vmax.f32 %v353, 0.0
    %v428 = vmax.f32 %v358, 0.0
    %v429 = vmax.f32 %v363, 0.0
    %v430 = vmax.f32 %v368, 0.0
    %v431 = vmax.f32 %v373, 0.0
    %v432 = vmax.f32 %v378, 0.0
    %v433 = vmax.f32 %v383, 0.0
    %v434 = vmax.f32 %v388, 0.0
    %v435 = vmax.f32 %v393, 0.0
    %v436 = vmax.f32 %v398, 0.0
    %v437 = vmax.f32 %v403, 0.0
    %v438 = vld [vmem:[%s3] sm:$0xff]
    %v439 = vld [vmem:[%s3 + $0x8] sm:$0xff]
    %v440 = vld [vmem:[%s3 + $0x10] sm:$0xff]
    %v441 = vld [vmem:[%s3 + $0x18] sm:$0xff]
    %v442 = vld [vmem:[%s3 + $0x20] sm:$0xff]
    %v443 = vld [vmem:[%s3 + $0x28] sm:$0xff]
    %v444 = vld [vmem:[%s3 + $0x30] sm:$0xff]
    %v445 = vld [vmem:[%s3 + $0x38] sm:$0xff]
    %v446 = vld [vmem:[%s3 + $0x40] sm:$0xff]
    %v447 = vld [vmem:[%s3 + $0x48] sm:$0xff]
    %v448 = vld [vmem:[%s3 + $0x50] sm:$0xff]
    %v449 = vld [vmem:[%s3 + $0x58] sm:$0xff]
    %v450 = vld [vmem:[%s3 + $0x60] sm:$0xff]
    %v451 = vld [vmem:[%s3 + $0x68] sm:$0xff]
    %v452 = vld [vmem:[%s3 + $0x70] sm:$0xff]
    %v453 = vld [vmem:[%s3 + $0x78] sm:$0xff]
    %v454 = vld [vmem:[%s4] sm:$0x1]
    %v456 = vlaneseq
    %v457 = vshrl.u32 %v456, 7
    %v458 = vsub.s32 0, %v457
    %v459 = vrot.slane %v454, %v458
    %461 = vmatprep.subr.mxu0 0.0
    %462 = vmatpush1.msra.mxu0 %v438
    %463 = vmatprep.subr.mxu0 0.0
    %464 = vmatpush1.msra.mxu0 %v439
    %465 = vmatprep.subr.mxu0 0.0
    %466 = vmatpush1.msra.mxu0 %v440
    %467 = vmatprep.subr.mxu0 0.0
    %468 = vmatpush1.msra.mxu0 %v441
    %469 = vmatprep.subr.mxu0 0.0
    %470 = vmatpush1.msra.mxu0 %v442
    %471 = vmatprep.subr.mxu0 0.0
    %472 = vmatpush1.msra.mxu0 %v443
    %473 = vmatprep.subr.mxu0 0.0
    %474 = vmatpush1.msra.mxu0 %v444
    %475 = vmatprep.subr.mxu0 0.0
    %476 = vmatpush1.msra.mxu0 %v445
    %477 = vmatprep.subr.mxu0 0.0
    %478 = vmatpush1.msra.mxu0 %v446
    %479 = vmatprep.subr.mxu0 0.0
    %480 = vmatpush1.msra.mxu0 %v447
    %481 = vmatprep.subr.mxu0 0.0
    %482 = vmatpush1.msra.mxu0 %v448
    %483 = vmatprep.subr.mxu0 0.0
    %484 = vmatpush1.msra.mxu0 %v449
    %485 = vmatprep.subr.mxu0 0.0
    %486 = vmatpush1.msra.mxu0 %v450
    %487 = vmatprep.subr.mxu0 0.0
    %488 = vmatpush1.msra.mxu0 %v451
    %489 = vmatprep.subr.mxu0 0.0
    %490 = vmatpush1.msra.mxu0 %v452
    %491 = vmatprep.subr.mxu0 0.0
    %492 = vmatpush1.msra.mxu0 %v453
    %493 = vmatprep.subr.mxu0 0.0
    %494 = vmatpush1.msra.mxu0 0.0
    %495 = vmatprep.subr.mxu0 0.0
    %496 = vmatpush1.msra.mxu0 0.0
    %497 = vmatprep.subr.mxu0 0.0
    %498 = vmatpush1.msra.mxu0 0.0
    %499 = vmatprep.subr.mxu0 0.0
    %500 = vmatpush1.msra.mxu0 0.0
    %501 = vmatprep.subr.mxu0 0.0
    %502 = vmatpush1.msra.mxu0 0.0
    %503 = vmatprep.subr.mxu0 0.0
    %504 = vmatpush1.msra.mxu0 0.0
    %505 = vmatprep.subr.mxu0 0.0
    %506 = vmatpush1.msra.mxu0 0.0
    %507 = vmatprep.subr.mxu0 0.0
    %508 = vmatpush1.msra.mxu0 0.0
    %509 = vmatprep.subr.mxu0 0.0
    %510 = vmatpush1.msra.mxu0 0.0
    %511 = vmatprep.subr.mxu0 0.0
    %512 = vmatpush1.msra.mxu0 0.0
    %513 = vmatprep.subr.mxu0 0.0
    %514 = vmatpush1.msra.mxu0 0.0
    %515 = vmatprep.subr.mxu0 0.0
    %516 = vmatpush1.msra.mxu0 0.0
    %517 = vmatprep.subr.mxu0 0.0
    %518 = vmatpush1.msra.mxu0 0.0
    %519 = vmatprep.subr.mxu0 0.0
    %520 = vmatpush1.msra.mxu0 0.0
    %521 = vmatprep.subr.mxu0 0.0
    %522 = vmatpush1.msra.mxu0 0.0
    %523 = vmatprep.subr.mxu0 0.0
    %524 = vmatpush1.msra.mxu0 0.0
    %525 = vmatprep.mubr.f32.mxu0 0.0
    %526 = vmatmul.mubr.f32.gmra.mrb[0].mxu0 %v406
    %v527 = vpop.f32.mrb[0].mxu0
    %v528 = vadd.f32 %v459, %v527
    %v529 = vpop.f32.mrb[0].mxu0
    %530 = vmatprep.mubr.f32.mxu0 0.0
    %531 = vmatmul.mubr.f32.gmra.mrb[0].mxu0 %v407
    %v532 = vpop.f32.mrb[0].mxu0
    %v533 = vadd.f32 %v459, %v532
    %v534 = vpop.f32.mrb[0].mxu0
    %535 = vmatprep.mubr.f32.mxu0 0.0
    %536 = vmatmul.mubr.f32.gmra.mrb[0].mxu0 %v408
    %v537 = vpop.f32.mrb[0].mxu0
    %v538 = vadd.f32 %v459, %v537
    %v539 = vpop.f32.mrb[0].mxu0
    %540 = vmatprep.mubr.f32.mxu0 0.0
    %541 = vmatmul.mubr.f32.gmra.mrb[0].mxu0 %v409
    %v542 = vpop.f32.mrb[0].mxu0
    %v543 = vadd.f32 %v459, %v542
    %v544 = vpop.f32.mrb[0].mxu0
    %545 = vmatprep.mubr.f32.mxu0 0.0
    %546 = vmatmul.mubr.f32.gmra.mrb[0].mxu0 %v410
    %v547 = vpop.f32.mrb[0].mxu0
    %v548 = vadd.f32 %v459, %v547
    %v549 = vpop.f32.mrb[0].mxu0
    %550 = vmatprep.mubr.f32.mxu0 0.0
    %551 = vmatmul.mubr.f32.gmra.mrb[0].mxu0 %v411
    %v552 = vpop.f32.mrb[0].mxu0
    %v553 = vadd.f32 %v459, %v552
    %v554 = vpop.f32.mrb[0].mxu0
    %555 = vmatprep.mubr.f32.mxu0 0.0
    %556 = vmatmul.mubr.f32.gmra.mrb[0].mxu0 %v412
    %v557 = vpop.f32.mrb[0].mxu0
    %v558 = vadd.f32 %v459, %v557
    %v559 = vpop.f32.mrb[0].mxu0
    %560 = vmatprep.mubr.f32.mxu0 0.0
    %561 = vmatmul.mubr.f32.gmra.mrb[0].mxu0 %v413
    %v562 = vpop.f32.mrb[0].mxu0
    %v563 = vadd.f32 %v459, %v562
    %v564 = vpop.f32.mrb[0].mxu0
    %565 = vmatprep.mubr.f32.mxu0 0.0
    %566 = vmatmul.mubr.f32.gmra.mrb[0].mxu0 %v414
    %v567 = vpop.f32.mrb[0].mxu0
    %v568 = vadd.f32 %v459, %v567
    %v569 = vpop.f32.mrb[0].mxu0
    %570 = vmatprep.mubr.f32.mxu0 0.0
    %571 = vmatmul.mubr.f32.gmra.mrb[0].mxu0 %v415
    %v572 = vpop.f32.mrb[0].mxu0
    %v573 = vadd.f32 %v459, %v572
    %v574 = vpop.f32.mrb[0].mxu0
    %575 = vmatprep.mubr.f32.mxu0 0.0
    %576 = vmatmul.mubr.f32.gmra.mrb[0].mxu0 %v416
    %v577 = vpop.f32.mrb[0].mxu0
    %v578 = vadd.f32 %v459, %v577
    %v579 = vpop.f32.mrb[0].mxu0
    %580 = vmatprep.mubr.f32.mxu0 0.0
    %581 = vmatmul.mubr.f32.gmra.mrb[0].mxu0 %v417
    %v582 = vpop.f32.mrb[0].mxu0
    %v583 = vadd.f32 %v459, %v582
    %v584 = vpop.f32.mrb[0].mxu0
    %585 = vmatprep.mubr.f32.mxu0 0.0
    %586 = vmatmul.mubr.f32.gmra.mrb[0].mxu0 %v418
    %v587 = vpop.f32.mrb[0].mxu0
    %v588 = vadd.f32 %v459, %v587
    %v589 = vpop.f32.mrb[0].mxu0
    %590 = vmatprep.mubr.f32.mxu0 0.0
    %591 = vmatmul.mubr.f32.gmra.mrb[0].mxu0 %v419
    %v592 = vpop.f32.mrb[0].mxu0
    %v593 = vadd.f32 %v459, %v592
    %v594 = vpop.f32.mrb[0].mxu0
    %595 = vmatprep.mubr.f32.mxu0 0.0
    %596 = vmatmul.mubr.f32.gmra.mrb[0].mxu0 %v420
    %v597 = vpop.f32.mrb[0].mxu0
    %v598 = vadd.f32 %v459, %v597
    %v599 = vpop.f32.mrb[0].mxu0
    %600 = vmatprep.mubr.f32.mxu0 0.0
    %601 = vmatmul.mubr.f32.gmra.mrb[0].mxu0 %v421
    %v602 = vpop.f32.mrb[0].mxu0
    %v603 = vadd.f32 %v459, %v602
    %v604 = vpop.f32.mrb[0].mxu0
    %605 = vmatprep.mubr.f32.mxu0 0.0
    %606 = vmatmul.mubr.f32.gmra.mrb[0].mxu0 %v422
    %v607 = vpop.f32.mrb[0].mxu0
    %v608 = vadd.f32 %v459, %v607
    %v609 = vpop.f32.mrb[0].mxu0
    %610 = vmatprep.mubr.f32.mxu0 0.0
    %611 = vmatmul.mubr.f32.gmra.mrb[0].mxu0 %v423
    %v612 = vpop.f32.mrb[0].mxu0
    %v613 = vadd.f32 %v459, %v612
    %v614 = vpop.f32.mrb[0].mxu0
    %615 = vmatprep.mubr.f32.mxu0 0.0
    %616 = vmatmul.mubr.f32.gmra.mrb[0].mxu0 %v424
    %v617 = vpop.f32.mrb[0].mxu0
    %v618 = vadd.f32 %v459, %v617
    %v619 = vpop.f32.mrb[0].mxu0
    %620 = vmatprep.mubr.f32.mxu0 0.0
    %621 = vmatmul.mubr.f32.gmra.mrb[0].mxu0 %v425
    %v622 = vpop.f32.mrb[0].mxu0
    %v623 = vadd.f32 %v459, %v622
    %v624 = vpop.f32.mrb[0].mxu0
    %625 = vmatprep.mubr.f32.mxu0 0.0
    %626 = vmatmul.mubr.f32.gmra.mrb[0].mxu0 %v426
    %v627 = vpop.f32.mrb[0].mxu0
    %v628 = vadd.f32 %v459, %v627
    %v629 = vpop.f32.mrb[0].mxu0
    %630 = vmatprep.mubr.f32.mxu0 0.0
    %631 = vmatmul.mubr.f32.gmra.mrb[0].mxu0 %v427
    %v632 = vpop.f32.mrb[0].mxu0
    %v633 = vadd.f32 %v459, %v632
    %v634 = vpop.f32.mrb[0].mxu0
    %635 = vmatprep.mubr.f32.mxu0 0.0
    %636 = vmatmul.mubr.f32.gmra.mrb[0].mxu0 %v428
    %v637 = vpop.f32.mrb[0].mxu0
    %v638 = vadd.f32 %v459, %v637
    %v639 = vpop.f32.mrb[0].mxu0
    %640 = vmatprep.mubr.f32.mxu0 0.0
    %641 = vmatmul.mubr.f32.gmra.mrb[0].mxu0 %v429
    %v642 = vpop.f32.mrb[0].mxu0
    %v643 = vadd.f32 %v459, %v642
    %v644 = vpop.f32.mrb[0].mxu0
    %645 = vmatprep.mubr.f32.mxu0 0.0
    %646 = vmatmul.mubr.f32.gmra.mrb[0].mxu0 %v430
    %v647 = vpop.f32.mrb[0].mxu0
    %v648 = vadd.f32 %v459, %v647
    %v649 = vpop.f32.mrb[0].mxu0
    %650 = vmatprep.mubr.f32.mxu0 0.0
    %651 = vmatmul.mubr.f32.gmra.mrb[0].mxu0 %v431
    %v652 = vpop.f32.mrb[0].mxu0
    %v653 = vadd.f32 %v459, %v652
    %v654 = vpop.f32.mrb[0].mxu0
    %655 = vmatprep.mubr.f32.mxu0 0.0
    %656 = vmatmul.mubr.f32.gmra.mrb[0].mxu0 %v432
    %v657 = vpop.f32.mrb[0].mxu0
    %v658 = vadd.f32 %v459, %v657
    %v659 = vpop.f32.mrb[0].mxu0
    %660 = vmatprep.mubr.f32.mxu0 0.0
    %661 = vmatmul.mubr.f32.gmra.mrb[0].mxu0 %v433
    %v662 = vpop.f32.mrb[0].mxu0
    %v663 = vadd.f32 %v459, %v662
    %v664 = vpop.f32.mrb[0].mxu0
    %665 = vmatprep.mubr.f32.mxu0 0.0
    %666 = vmatmul.mubr.f32.gmra.mrb[0].mxu0 %v434
    %v667 = vpop.f32.mrb[0].mxu0
    %v668 = vadd.f32 %v459, %v667
    %v669 = vpop.f32.mrb[0].mxu0
    %670 = vmatprep.mubr.f32.mxu0 0.0
    %671 = vmatmul.mubr.f32.gmra.mrb[0].mxu0 %v435
    %v672 = vpop.f32.mrb[0].mxu0
    %v673 = vadd.f32 %v459, %v672
    %v674 = vpop.f32.mrb[0].mxu0
    %675 = vmatprep.mubr.f32.mxu0 0.0
    %676 = vmatmul.mubr.f32.gmra.mrb[0].mxu0 %v436
    %v677 = vpop.f32.mrb[0].mxu0
    %v678 = vadd.f32 %v459, %v677
    %v679 = vpop.f32.mrb[0].mxu0
    %680 = vmatprep.mubr.f32.mxu0 0.0
    %681 = vmatmul.mubr.f32.gmra.mrb[0].mxu0 %v437
    %v682 = vpop.f32.mrb[0].mxu0
    %v683 = vadd.f32 %v459, %v682
    %v684 = vpop.f32.mrb[0].mxu0
    %685 = vdwg.mxu0
    %v686 = vmax.f32 %v528, 0.0
    %v687 = vmax.f32 %v533, 0.0
    %v688 = vmax.f32 %v538, 0.0
    %v689 = vmax.f32 %v543, 0.0
    %v690 = vmax.f32 %v548, 0.0
    %v691 = vmax.f32 %v553, 0.0
    %v692 = vmax.f32 %v558, 0.0
    %v693 = vmax.f32 %v563, 0.0
    %v694 = vmax.f32 %v568, 0.0
    %v695 = vmax.f32 %v573, 0.0
    %v696 = vmax.f32 %v578, 0.0
    %v697 = vmax.f32 %v583, 0.0
    %v698 = vmax.f32 %v588, 0.0
    %v699 = vmax.f32 %v593, 0.0
    %v700 = vmax.f32 %v598, 0.0
    %v701 = vmax.f32 %v603, 0.0
    %v702 = vmax.f32 %v608, 0.0
    %v703 = vmax.f32 %v613, 0.0
    %v704 = vmax.f32 %v618, 0.0
    %v705 = vmax.f32 %v623, 0.0
    %v706 = vmax.f32 %v628, 0.0
    %v707 = vmax.f32 %v633, 0.0
    %v708 = vmax.f32 %v638, 0.0
    %v709 = vmax.f32 %v643, 0.0
    %v710 = vmax.f32 %v648, 0.0
    %v711 = vmax.f32 %v653, 0.0
    %v712 = vmax.f32 %v658, 0.0
    %v713 = vmax.f32 %v663, 0.0
    %v714 = vmax.f32 %v668, 0.0
    %v715 = vmax.f32 %v673, 0.0
    %v716 = vmax.f32 %v678, 0.0
    %v717 = vmax.f32 %v683, 0.0
    %s718 = scalar_lea.vmem %s3, 128
    %v719 = vld [vmem:[%s718] sm:$0xff]
    %v720 = vld [vmem:[%s718 + $0x8] sm:$0xff]
    %v721 = vld [vmem:[%s718 + $0x10] sm:$0xff]
    %v722 = vld [vmem:[%s718 + $0x18] sm:$0xff]
    %v723 = vld [vmem:[%s718 + $0x20] sm:$0xff]
    %v724 = vld [vmem:[%s718 + $0x28] sm:$0xff]
    %v725 = vld [vmem:[%s718 + $0x30] sm:$0xff]
    %v726 = vld [vmem:[%s718 + $0x38] sm:$0xff]
    %v727 = vld [vmem:[%s718 + $0x40] sm:$0xff]
    %v728 = vld [vmem:[%s718 + $0x48] sm:$0xff]
    %v729 = vld [vmem:[%s718 + $0x50] sm:$0xff]
    %v730 = vld [vmem:[%s718 + $0x58] sm:$0xff]
    %v731 = vld [vmem:[%s718 + $0x60] sm:$0xff]
    %v732 = vld [vmem:[%s718 + $0x68] sm:$0xff]
    %v733 = vld [vmem:[%s718 + $0x70] sm:$0xff]
    %v734 = vld [vmem:[%s718 + $0x78] sm:$0xff]
    %s735 = scalar_lea.vmem %s4, 1
    %v736 = vld [vmem:[%s735] sm:$0x1]
    %v738 = vlaneseq
    %v739 = vshrl.u32 %v738, 7
    %v740 = vsub.s32 0, %v739
    %v741 = vrot.slane %v736, %v740
    %743 = vmatprep.subr.mxu0 0.0
    %744 = vmatpush1.msra.mxu0 %v719
    %745 = vmatprep.subr.mxu0 0.0
    %746 = vmatpush1.msra.mxu0 %v720
    %747 = vmatprep.subr.mxu0 0.0
    %748 = vmatpush1.msra.mxu0 %v721
    %749 = vmatprep.subr.mxu0 0.0
    %750 = vmatpush1.msra.mxu0 %v722
    %751 = vmatprep.subr.mxu0 0.0
    %752 = vmatpush1.msra.mxu0 %v723
    %753 = vmatprep.subr.mxu0 0.0
    %754 = vmatpush1.msra.mxu0 %v724
    %755 = vmatprep.subr.mxu0 0.0
    %756 = vmatpush1.msra.mxu0 %v725
    %757 = vmatprep.subr.mxu0 0.0
    %758 = vmatpush1.msra.mxu0 %v726
    %759 = vmatprep.subr.mxu0 0.0
    %760 = vmatpush1.msra.mxu0 %v727
    %761 = vmatprep.subr.mxu0 0.0
    %762 = vmatpush1.msra.mxu0 %v728
    %763 = vmatprep.subr.mxu0 0.0
    %764 = vmatpush1.msra.mxu0 %v729
    %765 = vmatprep.subr.mxu0 0.0
    %766 = vmatpush1.msra.mxu0 %v730
    %767 = vmatprep.subr.mxu0 0.0
    %768 = vmatpush1.msra.mxu0 %v731
    %769 = vmatprep.subr.mxu0 0.0
    %770 = vmatpush1.msra.mxu0 %v732
    %771 = vmatprep.subr.mxu0 0.0
    %772 = vmatpush1.msra.mxu0 %v733
    %773 = vmatprep.subr.mxu0 0.0
    %774 = vmatpush1.msra.mxu0 %v734
    %775 = vmatprep.subr.mxu0 0.0
    %776 = vmatpush1.msra.mxu0 0.0
    %777 = vmatprep.subr.mxu0 0.0
    %778 = vmatpush1.msra.mxu0 0.0
    %779 = vmatprep.subr.mxu0 0.0
    %780 = vmatpush1.msra.mxu0 0.0
    %781 = vmatprep.subr.mxu0 0.0
    %782 = vmatpush1.msra.mxu0 0.0
    %783 = vmatprep.subr.mxu0 0.0
    %784 = vmatpush1.msra.mxu0 0.0
    %785 = vmatprep.subr.mxu0 0.0
    %786 = vmatpush1.msra.mxu0 0.0
    %787 = vmatprep.subr.mxu0 0.0
    %788 = vmatpush1.msra.mxu0 0.0
    %789 = vmatprep.subr.mxu0 0.0
    %790 = vmatpush1.msra.mxu0 0.0
    %791 = vmatprep.subr.mxu0 0.0
    %792 = vmatpush1.msra.mxu0 0.0
    %793 = vmatprep.subr.mxu0 0.0
    %794 = vmatpush1.msra.mxu0 0.0
    %795 = vmatprep.subr.mxu0 0.0
    %796 = vmatpush1.msra.mxu0 0.0
    %797 = vmatprep.subr.mxu0 0.0
    %798 = vmatpush1.msra.mxu0 0.0
    %799 = vmatprep.subr.mxu0 0.0
    %800 = vmatpush1.msra.mxu0 0.0
    %801 = vmatprep.subr.mxu0 0.0
    %802 = vmatpush1.msra.mxu0 0.0
    %803 = vmatprep.subr.mxu0 0.0
    %804 = vmatpush1.msra.mxu0 0.0
    %805 = vmatprep.subr.mxu0 0.0
    %806 = vmatpush1.msra.mxu0 0.0
    %807 = vmatprep.mubr.f32.mxu0 0.0
    %808 = vmatmul.mubr.f32.gmra.mrb[0].mxu0 %v686
    %v809 = vpop.f32.mrb[0].mxu0
    %v810 = vadd.f32 %v741, %v809
    %v811 = vpop.f32.mrb[0].mxu0
    %812 = vmatprep.mubr.f32.mxu0 0.0
    %813 = vmatmul.mubr.f32.gmra.mrb[0].mxu0 %v687
    %v814 = vpop.f32.mrb[0].mxu0
    %v815 = vadd.f32 %v741, %v814
    %v816 = vpop.f32.mrb[0].mxu0
    %817 = vmatprep.mubr.f32.mxu0 0.0
    %818 = vmatmul.mubr.f32.gmra.mrb[0].mxu0 %v688
    %v819 = vpop.f32.mrb[0].mxu0
    %v820 = vadd.f32 %v741, %v819
    %v821 = vpop.f32.mrb[0].mxu0
    %822 = vmatprep.mubr.f32.mxu0 0.0
    %823 = vmatmul.mubr.f32.gmra.mrb[0].mxu0 %v689
    %v824 = vpop.f32.mrb[0].mxu0
    %v825 = vadd.f32 %v741, %v824
    %v826 = vpop.f32.mrb[0].mxu0
    %827 = vmatprep.mubr.f32.mxu0 0.0
    %828 = vmatmul.mubr.f32.gmra.mrb[0].mxu0 %v690
    %v829 = vpop.f32.mrb[0].mxu0
    %v830 = vadd.f32 %v741, %v829
    %v831 = vpop.f32.mrb[0].mxu0
    %832 = vmatprep.mubr.f32.mxu0 0.0
    %833 = vmatmul.mubr.f32.gmra.mrb[0].mxu0 %v691
    %v834 = vpop.f32.mrb[0].mxu0
    %v835 = vadd.f32 %v741, %v834
    %v836 = vpop.f32.mrb[0].mxu0
    %837 = vmatprep.mubr.f32.mxu0 0.0
    %838 = vmatmul.mubr.f32.gmra.mrb[0].mxu0 %v692
    %v839 = vpop.f32.mrb[0].mxu0
    %v840 = vadd.f32 %v741, %v839
    %v841 = vpop.f32.mrb[0].mxu0
    %842 = vmatprep.mubr.f32.mxu0 0.0
    %843 = vmatmul.mubr.f32.gmra.mrb[0].mxu0 %v693
    %v844 = vpop.f32.mrb[0].mxu0
    %v845 = vadd.f32 %v741, %v844
    %v846 = vpop.f32.mrb[0].mxu0
    %847 = vmatprep.mubr.f32.mxu0 0.0
    %848 = vmatmul.mubr.f32.gmra.mrb[0].mxu0 %v694
    %v849 = vpop.f32.mrb[0].mxu0
    %v850 = vadd.f32 %v741, %v849
    %v851 = vpop.f32.mrb[0].mxu0
    %852 = vmatprep.mubr.f32.mxu0 0.0
    %853 = vmatmul.mubr.f32.gmra.mrb[0].mxu0 %v695
    %v854 = vpop.f32.mrb[0].mxu0
    %v855 = vadd.f32 %v741, %v854
    %v856 = vpop.f32.mrb[0].mxu0
    %857 = vmatprep.mubr.f32.mxu0 0.0
    %858 = vmatmul.mubr.f32.gmra.mrb[0].mxu0 %v696
    %v859 = vpop.f32.mrb[0].mxu0
    %v860 = vadd.f32 %v741, %v859
    %v861 = vpop.f32.mrb[0].mxu0
    %862 = vmatprep.mubr.f32.mxu0 0.0
    %863 = vmatmul.mubr.f32.gmra.mrb[0].mxu0 %v697
    %v864 = vpop.f32.mrb[0].mxu0
    %v865 = vadd.f32 %v741, %v864
    %v866 = vpop.f32.mrb[0].mxu0
    %867 = vmatprep.mubr.f32.mxu0 0.0
    %868 = vmatmul.mubr.f32.gmra.mrb[0].mxu0 %v698
    %v869 = vpop.f32.mrb[0].mxu0
    %v870 = vadd.f32 %v741, %v869
    %v871 = vpop.f32.mrb[0].mxu0
    %872 = vmatprep.mubr.f32.mxu0 0.0
    %873 = vmatmul.mubr.f32.gmra.mrb[0].mxu0 %v699
    %v874 = vpop.f32.mrb[0].mxu0
    %v875 = vadd.f32 %v741, %v874
    %v876 = vpop.f32.mrb[0].mxu0
    %877 = vmatprep.mubr.f32.mxu0 0.0
    %878 = vmatmul.mubr.f32.gmra.mrb[0].mxu0 %v700
    %v879 = vpop.f32.mrb[0].mxu0
    %v880 = vadd.f32 %v741, %v879
    %v881 = vpop.f32.mrb[0].mxu0
    %882 = vmatprep.mubr.f32.mxu0 0.0
    %883 = vmatmul.mubr.f32.gmra.mrb[0].mxu0 %v701
    %v884 = vpop.f32.mrb[0].mxu0
    %v885 = vadd.f32 %v741, %v884
    %v886 = vpop.f32.mrb[0].mxu0
    %887 = vmatprep.mubr.f32.mxu0 0.0
    %888 = vmatmul.mubr.f32.gmra.mrb[0].mxu0 %v702
    %v889 = vpop.f32.mrb[0].mxu0
    %v890 = vadd.f32 %v741, %v889
    %v891 = vpop.f32.mrb[0].mxu0
    %892 = vmatprep.mubr.f32.mxu0 0.0
    %893 = vmatmul.mubr.f32.gmra.mrb[0].mxu0 %v703
    %v894 = vpop.f32.mrb[0].mxu0
    %v895 = vadd.f32 %v741, %v894
    %v896 = vpop.f32.mrb[0].mxu0
    %897 = vmatprep.mubr.f32.mxu0 0.0
    %898 = vmatmul.mubr.f32.gmra.mrb[0].mxu0 %v704
    %v899 = vpop.f32.mrb[0].mxu0
    %v900 = vadd.f32 %v741, %v899
    %v901 = vpop.f32.mrb[0].mxu0
    %902 = vmatprep.mubr.f32.mxu0 0.0
    %903 = vmatmul.mubr.f32.gmra.mrb[0].mxu0 %v705
    %v904 = vpop.f32.mrb[0].mxu0
    %v905 = vadd.f32 %v741, %v904
    %v906 = vpop.f32.mrb[0].mxu0
    %907 = vmatprep.mubr.f32.mxu0 0.0
    %908 = vmatmul.mubr.f32.gmra.mrb[0].mxu0 %v706
    %v909 = vpop.f32.mrb[0].mxu0
    %v910 = vadd.f32 %v741, %v909
    %v911 = vpop.f32.mrb[0].mxu0
    %912 = vmatprep.mubr.f32.mxu0 0.0
    %913 = vmatmul.mubr.f32.gmra.mrb[0].mxu0 %v707
    %v914 = vpop.f32.mrb[0].mxu0
    %v915 = vadd.f32 %v741, %v914
    %v916 = vpop.f32.mrb[0].mxu0
    %917 = vmatprep.mubr.f32.mxu0 0.0
    %918 = vmatmul.mubr.f32.gmra.mrb[0].mxu0 %v708
    %v919 = vpop.f32.mrb[0].mxu0
    %v920 = vadd.f32 %v741, %v919
    %v921 = vpop.f32.mrb[0].mxu0
    %922 = vmatprep.mubr.f32.mxu0 0.0
    %923 = vmatmul.mubr.f32.gmra.mrb[0].mxu0 %v709
    %v924 = vpop.f32.mrb[0].mxu0
    %v925 = vadd.f32 %v741, %v924
    %v926 = vpop.f32.mrb[0].mxu0
    %927 = vmatprep.mubr.f32.mxu0 0.0
    %928 = vmatmul.mubr.f32.gmra.mrb[0].mxu0 %v710
    %v929 = vpop.f32.mrb[0].mxu0
    %v930 = vadd.f32 %v741, %v929
    %v931 = vpop.f32.mrb[0].mxu0
    %932 = vmatprep.mubr.f32.mxu0 0.0
    %933 = vmatmul.mubr.f32.gmra.mrb[0].mxu0 %v711
    %v934 = vpop.f32.mrb[0].mxu0
    %v935 = vadd.f32 %v741, %v934
    %v936 = vpop.f32.mrb[0].mxu0
    %937 = vmatprep.mubr.f32.mxu0 0.0
    %938 = vmatmul.mubr.f32.gmra.mrb[0].mxu0 %v712
    %v939 = vpop.f32.mrb[0].mxu0
    %v940 = vadd.f32 %v741, %v939
    %v941 = vpop.f32.mrb[0].mxu0
    %942 = vmatprep.mubr.f32.mxu0 0.0
    %943 = vmatmul.mubr.f32.gmra.mrb[0].mxu0 %v713
    %v944 = vpop.f32.mrb[0].mxu0
    %v945 = vadd.f32 %v741, %v944
    %v946 = vpop.f32.mrb[0].mxu0
    %947 = vmatprep.mubr.f32.mxu0 0.0
    %948 = vmatmul.mubr.f32.gmra.mrb[0].mxu0 %v714
    %v949 = vpop.f32.mrb[0].mxu0
    %v950 = vadd.f32 %v741, %v949
    %v951 = vpop.f32.mrb[0].mxu0
    %952 = vmatprep.mubr.f32.mxu0 0.0
    %953 = vmatmul.mubr.f32.gmra.mrb[0].mxu0 %v715
    %v954 = vpop.f32.mrb[0].mxu0
    %v955 = vadd.f32 %v741, %v954
    %v956 = vpop.f32.mrb[0].mxu0
    %957 = vmatprep.mubr.f32.mxu0 0.0
    %958 = vmatmul.mubr.f32.gmra.mrb[0].mxu0 %v716
    %v959 = vpop.f32.mrb[0].mxu0
    %v960 = vadd.f32 %v741, %v959
    %v961 = vpop.f32.mrb[0].mxu0
    %962 = vmatprep.mubr.f32.mxu0 0.0
    %963 = vmatmul.mubr.f32.gmra.mrb[0].mxu0 %v717
    %v964 = vpop.f32.mrb[0].mxu0
    %v965 = vadd.f32 %v741, %v964
    %v966 = vpop.f32.mrb[0].mxu0
    %967 = vdwg.mxu0
    %v968 = vmax.f32 %v810, 0.0
    %v969 = vmax.f32 %v815, 0.0
    %v970 = vmax.f32 %v820, 0.0
    %v971 = vmax.f32 %v825, 0.0
    %v972 = vmax.f32 %v830, 0.0
    %v973 = vmax.f32 %v835, 0.0
    %v974 = vmax.f32 %v840, 0.0
    %v975 = vmax.f32 %v845, 0.0
    %v976 = vmax.f32 %v850, 0.0
    %v977 = vmax.f32 %v855, 0.0
    %v978 = vmax.f32 %v860, 0.0
    %v979 = vmax.f32 %v865, 0.0
    %v980 = vmax.f32 %v870, 0.0
    %v981 = vmax.f32 %v875, 0.0
    %v982 = vmax.f32 %v880, 0.0
    %v983 = vmax.f32 %v885, 0.0
    %v984 = vmax.f32 %v890, 0.0
    %v985 = vmax.f32 %v895, 0.0
    %v986 = vmax.f32 %v900, 0.0
    %v987 = vmax.f32 %v905, 0.0
    %v988 = vmax.f32 %v910, 0.0
    %v989 = vmax.f32 %v915, 0.0
    %v990 = vmax.f32 %v920, 0.0
    %v991 = vmax.f32 %v925, 0.0
    %v992 = vmax.f32 %v930, 0.0
    %v993 = vmax.f32 %v935, 0.0
    %v994 = vmax.f32 %v940, 0.0
    %v995 = vmax.f32 %v945, 0.0
    %v996 = vmax.f32 %v950, 0.0
    %v997 = vmax.f32 %v955, 0.0
    %v998 = vmax.f32 %v960, 0.0
    %v999 = vmax.f32 %v965, 0.0
    %v1000 = vld [vmem:[#allocation2] sm:$0xff]
    %v1001 = vld [vmem:[#allocation2 + $0x8] sm:$0xff]
    %v1002 = vld [vmem:[#allocation2 + $0x10] sm:$0xff]
    %v1003 = vld [vmem:[#allocation2 + $0x18] sm:$0xff]
    %v1004 = vld [vmem:[#allocation2 + $0x20] sm:$0xff]
    %v1005 = vld [vmem:[#allocation2 + $0x28] sm:$0xff]
    %v1006 = vld [vmem:[#allocation2 + $0x30] sm:$0xff]
    %v1007 = vld [vmem:[#allocation2 + $0x38] sm:$0xff]
    %v1008 = vld [vmem:[#allocation2 + $0x40] sm:$0xff]
    %v1009 = vld [vmem:[#allocation2 + $0x48] sm:$0xff]
    %v1010 = vld [vmem:[#allocation2 + $0x50] sm:$0xff]
    %v1011 = vld [vmem:[#allocation2 + $0x58] sm:$0xff]
    %v1012 = vld [vmem:[#allocation2 + $0x60] sm:$0xff]
    %v1013 = vld [vmem:[#allocation2 + $0x68] sm:$0xff]
    %v1014 = vld [vmem:[#allocation2 + $0x70] sm:$0xff]
    %v1015 = vld [vmem:[#allocation2 + $0x78] sm:$0xff]
    %v1016 = vld [vmem:[%s6] sm:$0x1]
    %v1018 = vlaneseq
    %v1019 = vshrl.u32 %v1018, 7
    %v1020 = vsub.s32 0, %v1019
    %v1021 = vrot.slane %v1016, %v1020
    %1023 = vmatprep.subr.mxu0 0.0
    %1024 = vmatpush1.msra.mxu0 %v1000
    %1025 = vmatprep.subr.mxu0 0.0
    %1026 = vmatpush1.msra.mxu0 %v1001
    %1027 = vmatprep.subr.mxu0 0.0
    %1028 = vmatpush1.msra.mxu0 %v1002
    %1029 = vmatprep.subr.mxu0 0.0
    %1030 = vmatpush1.msra.mxu0 %v1003
    %1031 = vmatprep.subr.mxu0 0.0
    %1032 = vmatpush1.msra.mxu0 %v1004
    %1033 = vmatprep.subr.mxu0 0.0
    %1034 = vmatpush1.msra.mxu0 %v1005
    %1035 = vmatprep.subr.mxu0 0.0
    %1036 = vmatpush1.msra.mxu0 %v1006
    %1037 = vmatprep.subr.mxu0 0.0
    %1038 = vmatpush1.msra.mxu0 %v1007
    %1039 = vmatprep.subr.mxu0 0.0
    %1040 = vmatpush1.msra.mxu0 %v1008
    %1041 = vmatprep.subr.mxu0 0.0
    %1042 = vmatpush1.msra.mxu0 %v1009
    %1043 = vmatprep.subr.mxu0 0.0
    %1044 = vmatpush1.msra.mxu0 %v1010
    %1045 = vmatprep.subr.mxu0 0.0
    %1046 = vmatpush1.msra.mxu0 %v1011
    %1047 = vmatprep.subr.mxu0 0.0
    %1048 = vmatpush1.msra.mxu0 %v1012
    %1049 = vmatprep.subr.mxu0 0.0
    %1050 = vmatpush1.msra.mxu0 %v1013
    %1051 = vmatprep.subr.mxu0 0.0
    %1052 = vmatpush1.msra.mxu0 %v1014
    %1053 = vmatprep.subr.mxu0 0.0
    %1054 = vmatpush1.msra.mxu0 %v1015
    %1055 = vmatprep.subr.mxu0 0.0
    %1056 = vmatpush1.msra.mxu0 0.0
    %1057 = vmatprep.subr.mxu0 0.0
    %1058 = vmatpush1.msra.mxu0 0.0
    %1059 = vmatprep.subr.mxu0 0.0
    %1060 = vmatpush1.msra.mxu0 0.0
    %1061 = vmatprep.subr.mxu0 0.0
    %1062 = vmatpush1.msra.mxu0 0.0
    %1063 = vmatprep.subr.mxu0 0.0
    %1064 = vmatpush1.msra.mxu0 0.0
    %1065 = vmatprep.subr.mxu0 0.0
    %1066 = vmatpush1.msra.mxu0 0.0
    %1067 = vmatprep.subr.mxu0 0.0
    %1068 = vmatpush1.msra.mxu0 0.0
    %1069 = vmatprep.subr.mxu0 0.0
    %1070 = vmatpush1.msra.mxu0 0.0
    %1071 = vmatprep.subr.mxu0 0.0
    %1072 = vmatpush1.msra.mxu0 0.0
    %1073 = vmatprep.subr.mxu0 0.0
    %1074 = vmatpush1.msra.mxu0 0.0
    %1075 = vmatprep.subr.mxu0 0.0
    %1076 = vmatpush1.msra.mxu0 0.0
    %1077 = vmatprep.subr.mxu0 0.0
    %1078 = vmatpush1.msra.mxu0 0.0
    %1079 = vmatprep.subr.mxu0 0.0
    %1080 = vmatpush1.msra.mxu0 0.0
    %1081 = vmatprep.subr.mxu0 0.0
    %1082 = vmatpush1.msra.mxu0 0.0
    %1083 = vmatprep.subr.mxu0 0.0
    %1084 = vmatpush1.msra.mxu0 0.0
    %1085 = vmatprep.subr.mxu0 0.0
    %1086 = vmatpush1.msra.mxu0 0.0
    %1087 = vmatprep.mubr.f32.mxu0 0.0
    %1088 = vmatmul.mubr.f32.gmra.mrb[0].mxu0 %v968
    %v1089 = vpop.f32.mrb[0].mxu0
    %v1090 = vadd.f32 %v1021, %v1089
    %v1091 = vpop.f32.mrb[0].mxu0
    %1092 = vmatprep.mubr.f32.mxu0 0.0
    %1093 = vmatmul.mubr.f32.gmra.mrb[0].mxu0 %v969
    %v1094 = vpop.f32.mrb[0].mxu0
    %v1095 = vadd.f32 %v1021, %v1094
    %v1096 = vpop.f32.mrb[0].mxu0
    %1097 = vmatprep.mubr.f32.mxu0 0.0
    %1098 = vmatmul.mubr.f32.gmra.mrb[0].mxu0 %v970
    %v1099 = vpop.f32.mrb[0].mxu0
    %v1100 = vadd.f32 %v1021, %v1099
    %v1101 = vpop.f32.mrb[0].mxu0
    %1102 = vmatprep.mubr.f32.mxu0 0.0
    %1103 = vmatmul.mubr.f32.gmra.mrb[0].mxu0 %v971
    %v1104 = vpop.f32.mrb[0].mxu0
    %v1105 = vadd.f32 %v1021, %v1104
    %v1106 = vpop.f32.mrb[0].mxu0
    %1107 = vmatprep.mubr.f32.mxu0 0.0
    %1108 = vmatmul.mubr.f32.gmra.mrb[0].mxu0 %v972
    %v1109 = vpop.f32.mrb[0].mxu0
    %v1110 = vadd.f32 %v1021, %v1109
    %v1111 = vpop.f32.mrb[0].mxu0
    %1112 = vmatprep.mubr.f32.mxu0 0.0
    %1113 = vmatmul.mubr.f32.gmra.mrb[0].mxu0 %v973
    %v1114 = vpop.f32.mrb[0].mxu0
    %v1115 = vadd.f32 %v1021, %v1114
    %v1116 = vpop.f32.mrb[0].mxu0
    %1117 = vmatprep.mubr.f32.mxu0 0.0
    %1118 = vmatmul.mubr.f32.gmra.mrb[0].mxu0 %v974
    %v1119 = vpop.f32.mrb[0].mxu0
    %v1120 = vadd.f32 %v1021, %v1119
    %v1121 = vpop.f32.mrb[0].mxu0
    %1122 = vmatprep.mubr.f32.mxu0 0.0
    %1123 = vmatmul.mubr.f32.gmra.mrb[0].mxu0 %v975
    %v1124 = vpop.f32.mrb[0].mxu0
    %v1125 = vadd.f32 %v1021, %v1124
    %v1126 = vpop.f32.mrb[0].mxu0
    %1127 = vmatprep.mubr.f32.mxu0 0.0
    %1128 = vmatmul.mubr.f32.gmra.mrb[0].mxu0 %v976
    %v1129 = vpop.f32.mrb[0].mxu0
    %v1130 = vadd.f32 %v1021, %v1129
    %v1131 = vpop.f32.mrb[0].mxu0
    %1132 = vmatprep.mubr.f32.mxu0 0.0
    %1133 = vmatmul.mubr.f32.gmra.mrb[0].mxu0 %v977
    %v1134 = vpop.f32.mrb[0].mxu0
    %v1135 = vadd.f32 %v1021, %v1134
    %v1136 = vpop.f32.mrb[0].mxu0
    %1137 = vmatprep.mubr.f32.mxu0 0.0
    %1138 = vmatmul.mubr.f32.gmra.mrb[0].mxu0 %v978
    %v1139 = vpop.f32.mrb[0].mxu0
    %v1140 = vadd.f32 %v1021, %v1139
    %v1141 = vpop.f32.mrb[0].mxu0
    %1142 = vmatprep.mubr.f32.mxu0 0.0
    %1143 = vmatmul.mubr.f32.gmra.mrb[0].mxu0 %v979
    %v1144 = vpop.f32.mrb[0].mxu0
    %v1145 = vadd.f32 %v1021, %v1144
    %v1146 = vpop.f32.mrb[0].mxu0
    %1147 = vmatprep.mubr.f32.mxu0 0.0
    %1148 = vmatmul.mubr.f32.gmra.mrb[0].mxu0 %v980
    %v1149 = vpop.f32.mrb[0].mxu0
    %v1150 = vadd.f32 %v1021, %v1149
    %v1151 = vpop.f32.mrb[0].mxu0
    %1152 = vmatprep.mubr.f32.mxu0 0.0
    %1153 = vmatmul.mubr.f32.gmra.mrb[0].mxu0 %v981
    %v1154 = vpop.f32.mrb[0].mxu0
    %v1155 = vadd.f32 %v1021, %v1154
    %v1156 = vpop.f32.mrb[0].mxu0
    %1157 = vmatprep.mubr.f32.mxu0 0.0
    %1158 = vmatmul.mubr.f32.gmra.mrb[0].mxu0 %v982
    %v1159 = vpop.f32.mrb[0].mxu0
    %v1160 = vadd.f32 %v1021, %v1159
    %v1161 = vpop.f32.mrb[0].mxu0
    %1162 = vmatprep.mubr.f32.mxu0 0.0
    %1163 = vmatmul.mubr.f32.gmra.mrb[0].mxu0 %v983
    %v1164 = vpop.f32.mrb[0].mxu0
    %v1165 = vadd.f32 %v1021, %v1164
    %v1166 = vpop.f32.mrb[0].mxu0
    %1167 = vmatprep.mubr.f32.mxu0 0.0
    %1168 = vmatmul.mubr.f32.gmra.mrb[0].mxu0 %v984
    %v1169 = vpop.f32.mrb[0].mxu0
    %v1170 = vadd.f32 %v1021, %v1169
    %v1171 = vpop.f32.mrb[0].mxu0
    %1172 = vmatprep.mubr.f32.mxu0 0.0
    %1173 = vmatmul.mubr.f32.gmra.mrb[0].mxu0 %v985
    %v1174 = vpop.f32.mrb[0].mxu0
    %v1175 = vadd.f32 %v1021, %v1174
    %v1176 = vpop.f32.mrb[0].mxu0
    %1177 = vmatprep.mubr.f32.mxu0 0.0
    %1178 = vmatmul.mubr.f32.gmra.mrb[0].mxu0 %v986
    %v1179 = vpop.f32.mrb[0].mxu0
    %v1180 = vadd.f32 %v1021, %v1179
    %v1181 = vpop.f32.mrb[0].mxu0
    %1182 = vmatprep.mubr.f32.mxu0 0.0
    %1183 = vmatmul.mubr.f32.gmra.mrb[0].mxu0 %v987
    %v1184 = vpop.f32.mrb[0].mxu0
    %v1185 = vadd.f32 %v1021, %v1184
    %v1186 = vpop.f32.mrb[0].mxu0
    %1187 = vmatprep.mubr.f32.mxu0 0.0
    %1188 = vmatmul.mubr.f32.gmra.mrb[0].mxu0 %v988
    %v1189 = vpop.f32.mrb[0].mxu0
    %v1190 = vadd.f32 %v1021, %v1189
    %v1191 = vpop.f32.mrb[0].mxu0
    %1192 = vmatprep.mubr.f32.mxu0 0.0
    %1193 = vmatmul.mubr.f32.gmra.mrb[0].mxu0 %v989
    %v1194 = vpop.f32.mrb[0].mxu0
    %v1195 = vadd.f32 %v1021, %v1194
    %v1196 = vpop.f32.mrb[0].mxu0
    %1197 = vmatprep.mubr.f32.mxu0 0.0
    %1198 = vmatmul.mubr.f32.gmra.mrb[0].mxu0 %v990
    %v1199 = vpop.f32.mrb[0].mxu0
    %v1200 = vadd.f32 %v1021, %v1199
    %v1201 = vpop.f32.mrb[0].mxu0
    %1202 = vmatprep.mubr.f32.mxu0 0.0
    %1203 = vmatmul.mubr.f32.gmra.mrb[0].mxu0 %v991
    %v1204 = vpop.f32.mrb[0].mxu0
    %v1205 = vadd.f32 %v1021, %v1204
    %v1206 = vpop.f32.mrb[0].mxu0
    %1207 = vmatprep.mubr.f32.mxu0 0.0
    %1208 = vmatmul.mubr.f32.gmra.mrb[0].mxu0 %v992
    %v1209 = vpop.f32.mrb[0].mxu0
    %v1210 = vadd.f32 %v1021, %v1209
    %v1211 = vpop.f32.mrb[0].mxu0
    %1212 = vmatprep.mubr.f32.mxu0 0.0
    %1213 = vmatmul.mubr.f32.gmra.mrb[0].mxu0 %v993
    %v1214 = vpop.f32.mrb[0].mxu0
    %v1215 = vadd.f32 %v1021, %v1214
    %v1216 = vpop.f32.mrb[0].mxu0
    %1217 = vmatprep.mubr.f32.mxu0 0.0
    %1218 = vmatmul.mubr.f32.gmra.mrb[0].mxu0 %v994
    %v1219 = vpop.f32.mrb[0].mxu0
    %v1220 = vadd.f32 %v1021, %v1219
    %v1221 = vpop.f32.mrb[0].mxu0
    %1222 = vmatprep.mubr.f32.mxu0 0.0
    %1223 = vmatmul.mubr.f32.gmra.mrb[0].mxu0 %v995
    %v1224 = vpop.f32.mrb[0].mxu0
    %v1225 = vadd.f32 %v1021, %v1224
    %v1226 = vpop.f32.mrb[0].mxu0
    %1227 = vmatprep.mubr.f32.mxu0 0.0
    %1228 = vmatmul.mubr.f32.gmra.mrb[0].mxu0 %v996
    %v1229 = vpop.f32.mrb[0].mxu0
    %v1230 = vadd.f32 %v1021, %v1229
    %v1231 = vpop.f32.mrb[0].mxu0
    %1232 = vmatprep.mubr.f32.mxu0 0.0
    %1233 = vmatmul.mubr.f32.gmra.mrb[0].mxu0 %v997
    %v1234 = vpop.f32.mrb[0].mxu0
    %v1235 = vadd.f32 %v1021, %v1234
    %v1236 = vpop.f32.mrb[0].mxu0
    %1237 = vmatprep.mubr.f32.mxu0 0.0
    %1238 = vmatmul.mubr.f32.gmra.mrb[0].mxu0 %v998
    %v1239 = vpop.f32.mrb[0].mxu0
    %v1240 = vadd.f32 %v1021, %v1239
    %v1241 = vpop.f32.mrb[0].mxu0
    %1242 = vmatprep.mubr.f32.mxu0 0.0
    %1243 = vmatmul.mubr.f32.gmra.mrb[0].mxu0 %v999
    %v1244 = vpop.f32.mrb[0].mxu0
    %v1245 = vadd.f32 %v1021, %v1244
    %v1246 = vpop.f32.mrb[0].mxu0
    %1247 = vdwg.mxu0
    %1248 = vst [vmem:[#allocation5] sm:$0xff] %v1090
    %1249 = vst [vmem:[#allocation5 + $0x8] sm:$0xff] %v1095
    %1250 = vst [vmem:[#allocation5 + $0x10] sm:$0xff] %v1100
    %1251 = vst [vmem:[#allocation5 + $0x18] sm:$0xff] %v1105
    %1252 = vst [vmem:[#allocation5 + $0x20] sm:$0xff] %v1110
    %1253 = vst [vmem:[#allocation5 + $0x28] sm:$0xff] %v1115
    %1254 = vst [vmem:[#allocation5 + $0x30] sm:$0xff] %v1120
    %1255 = vst [vmem:[#allocation5 + $0x38] sm:$0xff] %v1125
    %1256 = vst [vmem:[#allocation5 + $0x40] sm:$0xff] %v1130
    %1257 = vst [vmem:[#allocation5 + $0x48] sm:$0xff] %v1135
    %1258 = vst [vmem:[#allocation5 + $0x50] sm:$0xff] %v1140
    %1259 = vst [vmem:[#allocation5 + $0x58] sm:$0xff] %v1145
    %1260 = vst [vmem:[#allocation5 + $0x60] sm:$0xff] %v1150
    %1261 = vst [vmem:[#allocation5 + $0x68] sm:$0xff] %v1155
    %1262 = vst [vmem:[#allocation5 + $0x70] sm:$0xff] %v1160
    %1263 = vst [vmem:[#allocation5 + $0x78] sm:$0xff] %v1165
    %1264 = vst [vmem:[#allocation5 + $0x80] sm:$0xff] %v1170
    %1265 = vst [vmem:[#allocation5 + $0x88] sm:$0xff] %v1175
    %1266 = vst [vmem:[#allocation5 + $0x90] sm:$0xff] %v1180
    %1267 = vst [vmem:[#allocation5 + $0x98] sm:$0xff] %v1185
    %1268 = vst [vmem:[#allocation5 + $0xa0] sm:$0xff] %v1190
    %1269 = vst [vmem:[#allocation5 + $0xa8] sm:$0xff] %v1195
    %1270 = vst [vmem:[#allocation5 + $0xb0] sm:$0xff] %v1200
    %1271 = vst [vmem:[#allocation5 + $0xb8] sm:$0xff] %v1205
    %1272 = vst [vmem:[#allocation5 + $0xc0] sm:$0xff] %v1210
    %1273 = vst [vmem:[#allocation5 + $0xc8] sm:$0xff] %v1215
    %1274 = vst [vmem:[#allocation5 + $0xd0] sm:$0xff] %v1220
    %1275 = vst [vmem:[#allocation5 + $0xd8] sm:$0xff] %v1225
    %1276 = vst [vmem:[#allocation5 + $0xe0] sm:$0xff] %v1230
    %1277 = vst [vmem:[#allocation5 + $0xe8] sm:$0xff] %v1235
    %1278 = vst [vmem:[#allocation5 + $0xf0] sm:$0xff] %v1240
    %1279 = vst [vmem:[#allocation5 + $0xf8] sm:$0xff] %v1245
    // Predicated region
    $region34: #{tpu_custom_call.1} parent=1 // pred_check
      _
    $region35: #{tpu_custom_call.1} parent=1 // pred_check_branch
      %1281 = sbr.rel (0) target = $region37
    $region36: #{tpu_custom_call.1} parent=1 // pred_region
      %s1283 = ssub.s32 4096, 4096
      %1284 = vsyncadd [#allocation4], %s1283
      %s1285 = sshll.u32 [#allocation5], 4
      %s1286 = int_to_ptr.vmem [resolvable:$true] %s1285
      %1291 = dma.vmem_to_hbm [thread:$0]  %s1286, 4096, %s7, [#allocation4], 128, 128, 8
    $region37: #{tpu_custom_call.1} parent=1 // pred_fallthru
      _
    // Predicated region
    $region38: #{tpu_custom_call.1} parent=1 // pred_check
      _
    $region39: #{tpu_custom_call.1} parent=1 // pred_check_branch
      %1293 = sbr.rel (0) target = $region41
    $region40: #{tpu_custom_call.1} parent=1 // pred_region
      %1294 = dma.done [#allocation4], 4096
    $region41: #{tpu_custom_call.1} parent=1 // pred_fallthru
      _
    %1295 = vsyncpa [#allocation3], 1
    %1296 = vsyncpa [#allocation4], 1

</llo_original>
